<compile_context>
chip_gen: v7x
topology: tpu7x:2x2x1
jax: 0.10.0
libtpu: 0.0.40
codegen_flags: <defaults>
</compile_context>

<pallas_src>
import jax
import jax.numpy as jnp
from jax.experimental import pallas as pl
from jax.experimental.pallas import tpu as pltpu


def _round_up(x, m):
    return ((x + m - 1) // m) * m


_SUBLANE = 16                    # bf16 sublane packing (also satisfies f32's 8)
_VMEM_LIMIT = 32 * 1024 * 1024   # sized to actual need; leaves headroom on v7x


# ----------------------------------------------------------------------------
# Pallas kernels
# ----------------------------------------------------------------------------
def _encoder_fused_kernel(p_ref, pos_ref, we_ref, w1_ref, b1_ref, w2_ref,
                          wd_ref, bd_ref, o_ref):
    """patch-embed + pos + residual MLP + encoder->decoder embed, fused."""
    # tok = patches @ We + (pos + b_embed)        (bf16 MXU inputs, f32 acc)
    tok = jnp.dot(p_ref[...], we_ref[...], preferred_element_type=jnp.float32)
    tok = tok + pos_ref[...].astype(jnp.float32)
    # residual MLP: tok + GELU(tok @ W1 + b1) @ W2   (enc_b2 folded into bd)
    h = jnp.dot(tok.astype(jnp.bfloat16), w1_ref[...],
                preferred_element_type=jnp.float32)
    # NOTE: tanh-approx GELU (PyTorch nn.GELU default is the exact erf form).
    h = jax.nn.gelu(h + b1_ref[...].astype(jnp.float32))
    y = jnp.dot(h.astype(jnp.bfloat16), w2_ref[...],
                preferred_element_type=jnp.float32)
    res = tok + y
    # fused encoder->decoder width linear (removes a whole pallas_call + one
    # HBM round trip of the M x d_enc activation).
    dec = jnp.dot(res.astype(jnp.bfloat16), wd_ref[...],
                  preferred_element_type=jnp.float32)
    o_ref[...] = (dec + bd_ref[...].astype(jnp.float32)).astype(o_ref.dtype)


def _decoder_fused_kernel(x_ref, pos_ref, w1_ref, b1_ref, w2_ref,
                          wp_ref, bp_ref, o_ref):
    """pos-add + residual MLP + pixel predictor, fused (dec_b2 folded in bp)."""
    t = x_ref[...].astype(jnp.float32) + pos_ref[...].astype(jnp.float32)
    h = jnp.dot(t.astype(jnp.bfloat16), w1_ref[...],
                preferred_element_type=jnp.float32)
    h = jax.nn.gelu(h + b1_ref[...].astype(jnp.float32))
    y = jnp.dot(h.astype(jnp.bfloat16), w2_ref[...],
                preferred_element_type=jnp.float32)
    t = t + y
    pred = jnp.dot(t.astype(jnp.bfloat16), wp_ref[...],
                   preferred_element_type=jnp.float32)
    o_ref[...] = (pred + bp_ref[...].astype(jnp.float32)).astype(o_ref.dtype)


# ----------------------------------------------------------------------------
# pallas_call wrappers
# ----------------------------------------------------------------------------
def _encoder_call(vis, pos_vis, consts, out_dim, cost, max_tile=1024):
    """1-D row-tiled call; weights are grid-constant (stay resident in VMEM)."""
    M = vis.shape[0]
    if M <= max_tile:
        tile = M                               # block == full dim: always legal
    else:
        tile = (max_tile // _SUBLANE) * _SUBLANE
    grid = (pl.cdiv(M, tile),)                 # ragged last block handled by Pallas
    row_spec = lambda d: pl.BlockSpec((tile, d), lambda i: (i, 0))
    const_spec = lambda c: pl.BlockSpec(c.shape, lambda i: (0, 0))
    return pl.pallas_call(
        _encoder_fused_kernel,
        out_shape=jax.ShapeDtypeStruct((M, out_dim), jnp.bfloat16),
        grid=grid,
        in_specs=[row_spec(vis.shape[1]), row_spec(pos_vis.shape[1])]
                 + [const_spec(c) for c in consts],
        out_specs=pl.BlockSpec((tile, out_dim), lambda i: (i, 0)),
        compiler_params=pltpu.CompilerParams(
            # TODO(synk): on v7x use CORE_PARALLEL / pl.core_map so the two
            # TensorCores split the row grid; "parallel" is safe everywhere.
            dimension_semantics=("parallel",),
            vmem_limit_bytes=_VMEM_LIMIT),
        cost_estimate=cost,
    )(vis, pos_vis, *consts)


def _decoder_call(full, pos_dec, consts, out_dim, cost, max_tile_tokens=512):
    """2-D (token-tile, batch) grid; pos_dec indexed by token-tile only."""
    B, N, Dd = full.shape
    if N <= max_tile_tokens:
        tile_n = N
    else:
        tile_n = (max_tile_tokens // _SUBLANE) * _SUBLANE
    # batch innermost: the pos block index is unchanged across consecutive
    # steps, so Pallas skips its re-DMA; no BxNxD pos broadcast in HBM at all.
    grid = (pl.cdiv(N, tile_n), B)
    const_spec = lambda c: pl.BlockSpec(c.shape, lambda t, b: (0, 0))
    return pl.pallas_call(
        _decoder_fused_kernel,
        out_shape=jax.ShapeDtypeStruct((B, N, out_dim), jnp.bfloat16),
        grid=grid,
        in_specs=[pl.BlockSpec((None, tile_n, Dd), lambda t, b: (b, t, 0)),
                  pl.BlockSpec((tile_n, Dd), lambda t, b: (t, 0))]
                 + [const_spec(c) for c in consts],
        out_specs=pl.BlockSpec((None, tile_n, out_dim), lambda t, b: (b, t, 0)),
        compiler_params=pltpu.CompilerParams(
            dimension_semantics=("parallel", "parallel"),
            vmem_limit_bytes=_VMEM_LIMIT),
        cost_estimate=cost,
    )(full, pos_dec, *consts)


# ----------------------------------------------------------------------------
# MAE model (synthetic deterministic encoder / decoder pair)
# ----------------------------------------------------------------------------
class MAEPallas:
    def __init__(self, img_size=16, patch=4, in_chans=4,
                 d_enc=128, d_hidden=256, d_dec=128,
                 mask_ratio=0.75, seed=42):
        self.patch = patch
        self.in_chans = in_chans
        self.n_tokens = (img_size // patch) ** 2
        self.patch_dim = in_chans * patch * patch
        # pixel-predictor OUTPUT is lane-padded to 128 for unmasked stores
        self.patch_dim_pad = _round_up(max(self.patch_dim, 128), 128)
        self.mask_ratio = mask_ratio
        self.len_keep = max(1, int(self.n_tokens * (1.0 - mask_ratio)))
        self.d_enc, self.d_dec, self.d_hidden = d_enc, d_dec, d_hidden

        keys = jax.random.split(jax.random.PRNGKey(seed), 16)
        init = lambda k, s: (0.02 * jax.random.normal(k, s)).astype(jnp.float32)
        bf = jnp.bfloat16

        # ---- encoder params: bf16 MXU weights; bf16 pos/bias (adds happen on
        #      the f32 accumulator in-kernel, so precision impact is negligible)
        self.w_embed = init(keys[0], (self.patch_dim, d_enc)).astype(bf)
        b_embed = jnp.zeros((d_enc,), jnp.float32)
        # fold the patch-embed bias into the positional table
        self.pos_enc = (init(keys[1], (self.n_tokens, d_enc)) + b_embed).astype(bf)
        self.enc_w1 = init(keys[2], (d_enc, d_hidden)).astype(bf)
        self.enc_b1 = jnp.zeros((1, d_hidden), bf)
        self.enc_w2 = init(keys[3], (d_hidden, d_enc)).astype(bf)
        enc_b2 = jnp.zeros((d_enc,), jnp.float32)

        # ---- decoder params (encoder->decoder embed is fused into kernel 1) -
        w_dec = init(keys[4], (d_enc, d_dec))
        b_dec = jnp.zeros((d_dec,), jnp.float32)
        self.w_dec_embed = w_dec.astype(bf)
        # fold enc MLP output bias through the dec-embed weight
        self.b_dec_embed = (b_dec + enc_b2 @ w_dec).reshape(1, d_dec).astype(bf)
        self.mask_token = init(keys[5], (1, d_dec)).astype(bf)
        self.pos_dec = init(keys[6], (self.n_tokens, d_dec)).astype(bf)
        self.dec_w1 = init(keys[7], (d_dec, d_hidden)).astype(bf)
        self.dec_b1 = jnp.zeros((1, d_hidden), bf)
        self.dec_w2 = init(keys[8], (d_hidden, d_dec)).astype(bf)
        dec_b2 = jnp.zeros((d_dec,), jnp.float32)
        wp = init(keys[9], (d_dec, self.patch_dim))
        wp = jnp.pad(wp, ((0, 0), (0, self.patch_dim_pad - self.patch_dim)))
        b_pred = jnp.zeros((self.patch_dim_pad,), jnp.float32)
        self.w_pred = wp.astype(bf)                 # padded cols are zero
        # fold dec MLP output bias through the pixel-predictor weight
        self.b_pred = (b_pred + dec_b2 @ wp).reshape(1, -1).astype(bf)

        # NOTE: fixed key -> identical mask every forward (deterministic demo);
        # PyTorch MAE draws fresh noise per call.
        self._mask_key = keys[10]
        self._forward = jax.jit(self._forward_impl)

    # ---- glue (plain JAX) ---------------------------------------------------
    def patchify(self, x):
        B, C, H, W = x.shape
        p = self.patch
        x = x.reshape(B, C, H // p, p, W // p, p)
        x = jnp.transpose(x, (0, 2, 4, 1, 3, 5))          # B, h, w, C, p, p
        return x.reshape(B, self.n_tokens, self.patch_dim).astype(jnp.bfloat16)

    def random_masking(self, B):
        noise = jax.random.uniform(self._mask_key, (B, self.n_tokens))
        ids_shuffle = jnp.argsort(noise, axis=1)
        ids_restore = jnp.argsort(ids_shuffle, axis=1)
        ids_keep = ids_shuffle[:, :self.len_keep]
        mask = jnp.ones((B, self.n_tokens), jnp.float32)
        mask = mask.at[:, :self.len_keep].set(0.0)
        mask = jnp.take_along_axis(mask, ids_restore, axis=1)   # 0 keep, 1 drop
        return ids_keep, mask, ids_restore

    # ---- encoder (emits decoder-width tokens: dec-embed fused in) -----------
    def encoder(self, x):
        B = x.shape[0]
        patches = self.patchify(x)                              # [B, N, P] bf16
        ids_keep, mask, ids_restore = self.random_masking(B)
        # TODO(synk): at scale, fold these gathers into the kernel input DMA
        # via PrefetchScalarGridSpec + pl.Element row-gather index_maps.
        vis = jnp.take_along_axis(patches, ids_keep[:, :, None], axis=1)
        pos_vis = jnp.take(self.pos_enc, ids_keep, axis=0)      # [B, L, D] bf16

        M, P = B * self.len_keep, self.patch_dim
        De, Dh, Dd = self.d_enc, self.d_hidden, self.d_dec
        consts = [self.w_embed, self.enc_w1, self.enc_b1, self.enc_w2,
                  self.w_dec_embed, self.b_dec_embed]
        wbytes = sum(2 * int(c.size) for c in consts)           # bf16 weights once
        cost = pl.CostEstimate(
            flops=2 * M * (P * De + De * Dh + Dh * De + De * Dd),
            transcendentals=M * Dh,
            bytes_accessed=2 * M * (P + De + Dd) + wbytes)
        enc = _encoder_call(vis.reshape(M, P), pos_vis.reshape(M, De),
                            consts, out_dim=Dd, cost=cost)
        return enc.reshape(B, self.len_keep, Dd), mask, ids_restore

    # ---- decoder ------------------------------------------------------------
    def decoder(self, enc_tuple, x):
        y, mask, ids_restore = enc_tuple            # y is already decoder-width
        B, L, Dd = y.shape
        N, Dh, Pp = self.n_tokens, self.d_hidden, self.patch_dim_pad

        # append mask tokens + unshuffle back to original order (JAX glue)
        mask_tok = jnp.broadcast_to(self.mask_token[None], (B, N - L, Dd))
        full = jnp.concatenate([y, mask_tok], axis=1)
        full = jnp.take_along_axis(full, ids_restore[:, :, None], axis=1)

        consts = [self.dec_w1, self.dec_b1, self.dec_w2,
                  self.w_pred, self.b_pred]
        wbytes = sum(2 * int(c.size) for c in consts)
        cost = pl.CostEstimate(
            flops=2 * B * N * (2 * Dd * Dh + Dd * Pp),
            transcendentals=B * N * Dh,
            bytes_accessed=2 * (B * N * Dd + N * Dd + B * N * Pp) + wbytes)
        pred = _decoder_call(full, self.pos_dec, consts, out_dim=Pp, cost=cost)
        # drop the zero-padded lanes back to the true patch dim (single cheap
        # slice+cast; kernel output stays bf16 + lane-dense)
        return pred[..., :self.patch_dim].astype(jnp.float32)

    # ---- MAE.forward --------------------------------------------------------
    def _forward_impl(self, x):
        encoder_op, mask, ids_restore = self.encoder(x)
        decoder_op = self.decoder((encoder_op, mask, ids_restore), x)
        return decoder_op

    def __call__(self, x):
        return self._forward(x)


# ----------------------------------------------------------------------------
if __name__ == "__main__":
    B, C, H, W = 2, 4, 16, 16
    x = jax.random.normal(jax.random.PRNGKey(0), (B, C, H, W), jnp.float32)

    model = MAEPallas(img_size=H, patch=4, in_chans=C)
    out = jax.block_until_ready(model(x))

    assert out.shape == (B, model.n_tokens, model.patch_dim), out.shape
    assert jnp.all(jnp.isfinite(out))
    print("KERNEL_OK")
</pallas_src>

<mosaic_0001>
module attributes {stable_mosaic.version = 11 : i64} {
  func.func @_encoder_fused_kernel(%arg0: i32, %arg1: memref<8x64xbf16, #tpu.memory_space<vmem>>, %arg2: memref<8x128xbf16, #tpu.memory_space<vmem>>, %arg3: memref<64x128xbf16, #tpu.memory_space<vmem>>, %arg4: memref<128x256xbf16, #tpu.memory_space<vmem>>, %arg5: memref<1x256xbf16, #tpu.memory_space<vmem>>, %arg6: memref<256x128xbf16, #tpu.memory_space<vmem>>, %arg7: memref<128x128xbf16, #tpu.memory_space<vmem>>, %arg8: memref<1x128xbf16, #tpu.memory_space<vmem>>, %arg9: memref<8x128xbf16, #tpu.memory_space<vmem>>) attributes {dimension_semantics = [#tpu.dimension_semantics<parallel>], iteration_bounds = array<i64: 1>, scalar_prefetch = 0 : i64, scratch_operands = 0 : i64, tpu.core_type = #tpu.core_type<tc>, window_params = [{transform_indices = @transform_0, window_bounds = array<i64: 8, 64>}, {transform_indices = @transform_1, window_bounds = array<i64: 8, 128>}, {pipeline_mode = #tpu.pipeline_mode<synchronous>, transform_indices = @transform_2, window_bounds = array<i64: 64, 128>}, {pipeline_mode = #tpu.pipeline_mode<synchronous>, transform_indices = @transform_3, window_bounds = array<i64: 128, 256>}, {pipeline_mode = #tpu.pipeline_mode<synchronous>, transform_indices = @transform_4, window_bounds = array<i64: 1, 256>}, {pipeline_mode = #tpu.pipeline_mode<synchronous>, transform_indices = @transform_5, window_bounds = array<i64: 256, 128>}, {pipeline_mode = #tpu.pipeline_mode<synchronous>, transform_indices = @transform_6, window_bounds = array<i64: 128, 128>}, {pipeline_mode = #tpu.pipeline_mode<synchronous>, transform_indices = @transform_7, window_bounds = array<i64: 1, 128>}, {transform_indices = @transform_8, window_bounds = array<i64: 8, 128>}]} {
    %c0 = arith.constant 0 : index
    %c0_0 = arith.constant 0 : index
    %0 = vector.load %arg1[%c0, %c0_0] : memref<8x64xbf16, #tpu.memory_space<vmem>>, vector<8x64xbf16>
    %c0_1 = arith.constant 0 : index
    %c0_2 = arith.constant 0 : index
    %1 = vector.load %arg3[%c0_1, %c0_2] : memref<64x128xbf16, #tpu.memory_space<vmem>>, vector<64x128xbf16>
    %cst = arith.constant dense<0.000000e+00> : vector<8x128xf32>
    %2 = tpu.matmul %0, %1, %cst {dimension_numbers = #tpu.dot_dimension_numbers<[1], [0], [0], [1], [0, 0, 1, 1], [], []>} : vector<8x64xbf16>, vector<64x128xbf16>, vector<8x128xf32> -> vector<8x128xf32>
    %c0_3 = arith.constant 0 : index
    %c0_4 = arith.constant 0 : index
    %3 = vector.load %arg2[%c0_3, %c0_4] : memref<8x128xbf16, #tpu.memory_space<vmem>>, vector<8x128xbf16>
    %4 = arith.extf %3 : vector<8x128xbf16> to vector<8x128xf32>
    %5 = arith.addf %2, %4 : vector<8x128xf32>
    %6 = arith.truncf %5 : vector<8x128xf32> to vector<8x128xbf16>
    %c0_5 = arith.constant 0 : index
    %c0_6 = arith.constant 0 : index
    %7 = vector.load %arg4[%c0_5, %c0_6] : memref<128x256xbf16, #tpu.memory_space<vmem>>, vector<128x256xbf16>
    %cst_7 = arith.constant dense<0.000000e+00> : vector<8x256xf32>
    %8 = tpu.matmul %6, %7, %cst_7 {dimension_numbers = #tpu.dot_dimension_numbers<[1], [0], [0], [1], [0, 0, 1, 1], [], []>} : vector<8x128xbf16>, vector<128x256xbf16>, vector<8x256xf32> -> vector<8x256xf32>
    %c0_8 = arith.constant 0 : index
    %c0_9 = arith.constant 0 : index
    %9 = vector.load %arg5[%c0_8, %c0_9] : memref<1x256xbf16, #tpu.memory_space<vmem>>, vector<1x256xbf16>
    %10 = arith.extf %9 : vector<1x256xbf16> to vector<1x256xf32>
    %11 = vector.broadcast %10 : vector<1x256xf32> to vector<8x256xf32>
    %12 = arith.addf %8, %11 : vector<8x256xf32>
    %13 = arith.mulf %12, %12 : vector<8x256xf32>
    %14 = arith.mulf %12, %13 : vector<8x256xf32>
    %cst_10 = arith.constant 4.471500e-02 : f32
    %15 = vector.broadcast %cst_10 : f32 to vector<8x256xf32>
    %16 = arith.mulf %15, %14 : vector<8x256xf32>
    %17 = arith.addf %12, %16 : vector<8x256xf32>
    %cst_11 = arith.constant 0.797884583 : f32
    %18 = vector.broadcast %cst_11 : f32 to vector<8x256xf32>
    %19 = arith.mulf %18, %17 : vector<8x256xf32>
    %20 = math.tanh %19 : vector<8x256xf32>
    %cst_12 = arith.constant 1.000000e+00 : f32
    %21 = vector.broadcast %cst_12 : f32 to vector<8x256xf32>
    %22 = arith.addf %21, %20 : vector<8x256xf32>
    %cst_13 = arith.constant 5.000000e-01 : f32
    %23 = vector.broadcast %cst_13 : f32 to vector<8x256xf32>
    %24 = arith.mulf %23, %22 : vector<8x256xf32>
    %25 = arith.mulf %12, %24 : vector<8x256xf32>
    %26 = arith.truncf %25 : vector<8x256xf32> to vector<8x256xbf16>
    %c0_14 = arith.constant 0 : index
    %c0_15 = arith.constant 0 : index
    %27 = vector.load %arg6[%c0_14, %c0_15] : memref<256x128xbf16, #tpu.memory_space<vmem>>, vector<256x128xbf16>
    %cst_16 = arith.constant dense<0.000000e+00> : vector<8x128xf32>
    %28 = tpu.matmul %26, %27, %cst_16 {dimension_numbers = #tpu.dot_dimension_numbers<[1], [0], [0], [1], [0, 0, 1, 1], [], []>} : vector<8x256xbf16>, vector<256x128xbf16>, vector<8x128xf32> -> vector<8x128xf32>
    %29 = arith.addf %5, %28 : vector<8x128xf32>
    %30 = arith.truncf %29 : vector<8x128xf32> to vector<8x128xbf16>
    %c0_17 = arith.constant 0 : index
    %c0_18 = arith.constant 0 : index
    %31 = vector.load %arg7[%c0_17, %c0_18] : memref<128x128xbf16, #tpu.memory_space<vmem>>, vector<128x128xbf16>
    %cst_19 = arith.constant dense<0.000000e+00> : vector<8x128xf32>
    %32 = tpu.matmul %30, %31, %cst_19 {dimension_numbers = #tpu.dot_dimension_numbers<[1], [0], [0], [1], [0, 0, 1, 1], [], []>} : vector<8x128xbf16>, vector<128x128xbf16>, vector<8x128xf32> -> vector<8x128xf32>
    %c0_20 = arith.constant 0 : index
    %c0_21 = arith.constant 0 : index
    %33 = vector.load %arg8[%c0_20, %c0_21] : memref<1x128xbf16, #tpu.memory_space<vmem>>, vector<1x128xbf16>
    %34 = arith.extf %33 : vector<1x128xbf16> to vector<1x128xf32>
    %35 = vector.broadcast %34 : vector<1x128xf32> to vector<8x128xf32>
    %36 = arith.addf %32, %35 : vector<8x128xf32>
    %37 = arith.truncf %36 : vector<8x128xf32> to vector<8x128xbf16>
    %c0_22 = arith.constant 0 : index
    %c0_23 = arith.constant 0 : index
    %38 = vector.load %arg9[%c0_22, %c0_23] : memref<8x128xbf16, #tpu.memory_space<vmem>>, vector<8x128xbf16>
    tpu.vector_store %arg9[%c0_22, %c0_23], %37 {strides = array<i32>} : memref<8x128xbf16, #tpu.memory_space<vmem>>, vector<8x128xbf16>,
    return
  }
  func.func @transform_0(%arg0: i32) -> (i32, i32) {
    %c0_i32 = arith.constant 0 : i32
    %c0_i32_0 = arith.constant 0 : i32
    return %arg0, %c0_i32 : i32, i32
  }
  func.func @transform_1(%arg0: i32) -> (i32, i32) {
    %c0_i32 = arith.constant 0 : i32
    %c0_i32_0 = arith.constant 0 : i32
    return %arg0, %c0_i32 : i32, i32
  }
  func.func @transform_2(%arg0: i32) -> (i32, i32) {
    %c0_i32 = arith.constant 0 : i32
    %c0_i32_0 = arith.constant 0 : i32
    %c0_i32_1 = arith.constant 0 : i32
    return %c0_i32, %c0_i32_0 : i32, i32
  }
  func.func @transform_3(%arg0: i32) -> (i32, i32) {
    %c0_i32 = arith.constant 0 : i32
    %c0_i32_0 = arith.constant 0 : i32
    %c0_i32_1 = arith.constant 0 : i32
    return %c0_i32, %c0_i32_0 : i32, i32
  }
  func.func @transform_4(%arg0: i32) -> (i32, i32) {
    %c0_i32 = arith.constant 0 : i32
    %c0_i32_0 = arith.constant 0 : i32
    %c0_i32_1 = arith.constant 0 : i32
    return %c0_i32, %c0_i32_0 : i32, i32
  }
  func.func @transform_5(%arg0: i32) -> (i32, i32) {
    %c0_i32 = arith.constant 0 : i32
    %c0_i32_0 = arith.constant 0 : i32
    %c0_i32_1 = arith.constant 0 : i32
    return %c0_i32, %c0_i32_0 : i32, i32
  }
  func.func @transform_6(%arg0: i32) -> (i32, i32) {
    %c0_i32 = arith.constant 0 : i32
    %c0_i32_0 = arith.constant 0 : i32
    %c0_i32_1 = arith.constant 0 : i32
    return %c0_i32, %c0_i32_0 : i32, i32
  }
  func.func @transform_7(%arg0: i32) -> (i32, i32) {
    %c0_i32 = arith.constant 0 : i32
    %c0_i32_0 = arith.constant 0 : i32
    %c0_i32_1 = arith.constant 0 : i32
    return %c0_i32, %c0_i32_0 : i32, i32
  }
  func.func @transform_8(%arg0: i32) -> (i32, i32) {
    %c0_i32 = arith.constant 0 : i32
    %c0_i32_0 = arith.constant 0 : i32
    return %arg0, %c0_i32 : i32, i32
  }
}

module attributes {stable_mosaic.version = 11 : i64} {
  func.func @_decoder_fused_kernel(%arg0: i32, %arg1: i32, %arg2: memref<1x16x128xbf16, #tpu.memory_space<vmem>>, %arg3: memref<16x128xbf16, #tpu.memory_space<vmem>>, %arg4: memref<128x256xbf16, #tpu.memory_space<vmem>>, %arg5: memref<1x256xbf16, #tpu.memory_space<vmem>>, %arg6: memref<256x128xbf16, #tpu.memory_space<vmem>>, %arg7: memref<128x128xbf16, #tpu.memory_space<vmem>>, %arg8: memref<1x128xbf16, #tpu.memory_space<vmem>>, %arg9: memref<1x16x128xbf16, #tpu.memory_space<vmem>>) attributes {dimension_semantics = [#tpu.dimension_semantics<parallel>, #tpu.dimension_semantics<parallel>], iteration_bounds = array<i64: 1, 2>, scalar_prefetch = 0 : i64, scratch_operands = 0 : i64, tpu.core_type = #tpu.core_type<tc>, window_params = [{transform_indices = @transform_0, window_bounds = array<i64: 1, 16, 128>}, {transform_indices = @transform_1, window_bounds = array<i64: 16, 128>}, {pipeline_mode = #tpu.pipeline_mode<synchronous>, transform_indices = @transform_2, window_bounds = array<i64: 128, 256>}, {pipeline_mode = #tpu.pipeline_mode<synchronous>, transform_indices = @transform_3, window_bounds = array<i64: 1, 256>}, {pipeline_mode = #tpu.pipeline_mode<synchronous>, transform_indices = @transform_4, window_bounds = array<i64: 256, 128>}, {pipeline_mode = #tpu.pipeline_mode<synchronous>, transform_indices = @transform_5, window_bounds = array<i64: 128, 128>}, {pipeline_mode = #tpu.pipeline_mode<synchronous>, transform_indices = @transform_6, window_bounds = array<i64: 1, 128>}, {transform_indices = @transform_7, window_bounds = array<i64: 1, 16, 128>}]} {
    %c0 = arith.constant 0 : index
    %c0_0 = arith.constant 0 : index
    %c0_1 = arith.constant 0 : index
    %0 = vector.load %arg2[%c0, %c0_0, %c0_1] : memref<1x16x128xbf16, #tpu.memory_space<vmem>>, vector<1x16x128xbf16>
    %1 = vector.shape_cast %0 : vector<1x16x128xbf16> to vector<16x128xbf16>
    %2 = arith.extf %1 : vector<16x128xbf16> to vector<16x128xf32>
    %c0_2 = arith.constant 0 : index
    %c0_3 = arith.constant 0 : index
    %3 = vector.load %arg3[%c0_2, %c0_3] : memref<16x128xbf16, #tpu.memory_space<vmem>>, vector<16x128xbf16>
    %4 = arith.extf %3 : vector<16x128xbf16> to vector<16x128xf32>
    %5 = arith.addf %2, %4 : vector<16x128xf32>
    %6 = arith.truncf %5 : vector<16x128xf32> to vector<16x128xbf16>
    %c0_4 = arith.constant 0 : index
    %c0_5 = arith.constant 0 : index
    %7 = vector.load %arg4[%c0_4, %c0_5] : memref<128x256xbf16, #tpu.memory_space<vmem>>, vector<128x256xbf16>
    %cst = arith.constant dense<0.000000e+00> : vector<16x256xf32>
    %8 = tpu.matmul %6, %7, %cst {dimension_numbers = #tpu.dot_dimension_numbers<[1], [0], [0], [1], [0, 0, 1, 1], [], []>} : vector<16x128xbf16>, vector<128x256xbf16>, vector<16x256xf32> -> vector<16x256xf32>
    %c0_6 = arith.constant 0 : index
    %c0_7 = arith.constant 0 : index
    %9 = vector.load %arg5[%c0_6, %c0_7] : memref<1x256xbf16, #tpu.memory_space<vmem>>, vector<1x256xbf16>
    %10 = arith.extf %9 : vector<1x256xbf16> to vector<1x256xf32>
    %11 = vector.broadcast %10 : vector<1x256xf32> to vector<16x256xf32>
    %12 = arith.addf %8, %11 : vector<16x256xf32>
    %13 = arith.mulf %12, %12 : vector<16x256xf32>
    %14 = arith.mulf %12, %13 : vector<16x256xf32>
    %cst_8 = arith.constant 4.471500e-02 : f32
    %15 = vector.broadcast %cst_8 : f32 to vector<16x256xf32>
    %16 = arith.mulf %15, %14 : vector<16x256xf32>
    %17 = arith.addf %12, %16 : vector<16x256xf32>
    %cst_9 = arith.constant 0.797884583 : f32
    %18 = vector.broadcast %cst_9 : f32 to vector<16x256xf32>
    %19 = arith.mulf %18, %17 : vector<16x256xf32>
    %20 = math.tanh %19 : vector<16x256xf32>
    %cst_10 = arith.constant 1.000000e+00 : f32
    %21 = vector.broadcast %cst_10 : f32 to vector<16x256xf32>
    %22 = arith.addf %21, %20 : vector<16x256xf32>
    %cst_11 = arith.constant 5.000000e-01 : f32
    %23 = vector.broadcast %cst_11 : f32 to vector<16x256xf32>
    %24 = arith.mulf %23, %22 : vector<16x256xf32>
    %25 = arith.mulf %12, %24 : vector<16x256xf32>
    %26 = arith.truncf %25 : vector<16x256xf32> to vector<16x256xbf16>
    %c0_12 = arith.constant 0 : index
    %c0_13 = arith.constant 0 : index
    %27 = vector.load %arg6[%c0_12, %c0_13] : memref<256x128xbf16, #tpu.memory_space<vmem>>, vector<256x128xbf16>
    %cst_14 = arith.constant dense<0.000000e+00> : vector<16x128xf32>
    %28 = tpu.matmul %26, %27, %cst_14 {dimension_numbers = #tpu.dot_dimension_numbers<[1], [0], [0], [1], [0, 0, 1, 1], [], []>} : vector<16x256xbf16>, vector<256x128xbf16>, vector<16x128xf32> -> vector<16x128xf32>
    %29 = arith.addf %5, %28 : vector<16x128xf32>
    %30 = arith.truncf %29 : vector<16x128xf32> to vector<16x128xbf16>
    %c0_15 = arith.constant 0 : index
    %c0_16 = arith.constant 0 : index
    %31 = vector.load %arg7[%c0_15, %c0_16] : memref<128x128xbf16, #tpu.memory_space<vmem>>, vector<128x128xbf16>
    %cst_17 = arith.constant dense<0.000000e+00> : vector<16x128xf32>
    %32 = tpu.matmul %30, %31, %cst_17 {dimension_numbers = #tpu.dot_dimension_numbers<[1], [0], [0], [1], [0, 0, 1, 1], [], []>} : vector<16x128xbf16>, vector<128x128xbf16>, vector<16x128xf32> -> vector<16x128xf32>
    %c0_18 = arith.constant 0 : index
    %c0_19 = arith.constant 0 : index
    %33 = vector.load %arg8[%c0_18, %c0_19] : memref<1x128xbf16, #tpu.memory_space<vmem>>, vector<1x128xbf16>
    %34 = arith.extf %33 : vector<1x128xbf16> to vector<1x128xf32>
    %35 = vector.broadcast %34 : vector<1x128xf32> to vector<16x128xf32>
    %36 = arith.addf %32, %35 : vector<16x128xf32>
    %37 = arith.truncf %36 : vector<16x128xf32> to vector<16x128xbf16>
    %c0_20 = arith.constant 0 : index
    %c0_21 = arith.constant 0 : index
    %c0_22 = arith.constant 0 : index
    %38 = vector.load %arg9[%c0_20, %c0_21, %c0_22] : memref<1x16x128xbf16, #tpu.memory_space<vmem>>, vector<1x16x128xbf16>
    %39 = vector.shape_cast %38 : vector<1x16x128xbf16> to vector<16x128xbf16>
    %40 = vector.shape_cast %37 : vector<16x128xbf16> to vector<1x16x128xbf16>
    tpu.vector_store %arg9[%c0_20, %c0_21, %c0_22], %40 {strides = array<i32>} : memref<1x16x128xbf16, #tpu.memory_space<vmem>>, vector<1x16x128xbf16>,
    return
  }
  func.func @transform_0(%arg0: i32, %arg1: i32) -> (i32, i32, i32) {
    %c0_i32 = arith.constant 0 : i32
    %c0_i32_0 = arith.constant 0 : i32
    return %arg1, %arg0, %c0_i32 : i32, i32, i32
  }
  func.func @transform_1(%arg0: i32, %arg1: i32) -> (i32, i32) {
    %c0_i32 = arith.constant 0 : i32
    %c0_i32_0 = arith.constant 0 : i32
    return %arg0, %c0_i32 : i32, i32
  }
  func.func @transform_2(%arg0: i32, %arg1: i32) -> (i32, i32) {
    %c0_i32 = arith.constant 0 : i32
    %c0_i32_0 = arith.constant 0 : i32
    %c0_i32_1 = arith.constant 0 : i32
    return %c0_i32, %c0_i32_0 : i32, i32
  }
  func.func @transform_3(%arg0: i32, %arg1: i32) -> (i32, i32) {
    %c0_i32 = arith.constant 0 : i32
    %c0_i32_0 = arith.constant 0 : i32
    %c0_i32_1 = arith.constant 0 : i32
    return %c0_i32, %c0_i32_0 : i32, i32
  }
  func.func @transform_4(%arg0: i32, %arg1: i32) -> (i32, i32) {
    %c0_i32 = arith.constant 0 : i32
    %c0_i32_0 = arith.constant 0 : i32
    %c0_i32_1 = arith.constant 0 : i32
    return %c0_i32, %c0_i32_0 : i32, i32
  }
  func.func @transform_5(%arg0: i32, %arg1: i32) -> (i32, i32) {
    %c0_i32 = arith.constant 0 : i32
    %c0_i32_0 = arith.constant 0 : i32
    %c0_i32_1 = arith.constant 0 : i32
    return %c0_i32, %c0_i32_0 : i32, i32
  }
  func.func @transform_6(%arg0: i32, %arg1: i32) -> (i32, i32) {
    %c0_i32 = arith.constant 0 : i32
    %c0_i32_0 = arith.constant 0 : i32
    %c0_i32_1 = arith.constant 0 : i32
    return %c0_i32, %c0_i32_0 : i32, i32
  }
  func.func @transform_7(%arg0: i32, %arg1: i32) -> (i32, i32, i32) {
    %c0_i32 = arith.constant 0 : i32
    %c0_i32_0 = arith.constant 0 : i32
    return %arg1, %arg0, %c0_i32 : i32, i32, i32
  }
}

</mosaic_0001>

<llo_original>
// kernel: _forward_impl.2
$region0: #{_forward_impl.2}
  #allocation0 [shape = 'u32[]', space=smem, size = 0x4, offset = 0x4, fixed_abs, tag = 'smem constant byte address 0x4 - core index']
  #allocation1 [shape = 'u32[144,128]{1,0:T(1,128)}', space=vmem, size = 0x12000, scoped, tag = 'internal scratch']
  %s0 = inlined_call_operand.vmem [shape: bf16[8,64], index: 0, kind: input, shape index: {}]
  %s1 = inlined_call_operand.vmem [shape: bf16[8,128], index: 1, kind: input, shape index: {}]
  %s2 = inlined_call_operand.vmem [shape: bf16[64,128], index: 2, kind: input, shape index: {}]
  %s3 = inlined_call_operand.vmem [shape: bf16[128,256], index: 3, kind: input, shape index: {}]
  %s4 = inlined_call_operand.vmem [shape: bf16[1,256], index: 4, kind: input, shape index: {}]
  %s5 = inlined_call_operand.vmem [shape: bf16[256,128], index: 5, kind: input, shape index: {}]
  %s6 = inlined_call_operand.vmem [shape: bf16[128,128], index: 6, kind: input, shape index: {}]
  %s7 = inlined_call_operand.vmem [shape: bf16[1,128], index: 7, kind: input, shape index: {}]
  %s8 = inlined_call_operand.vmem [shape: bf16[8,128], index: 8, kind: output, shape index: {}]
  %s9 = sld [smem:[#allocation0]]
  $region42: #{_forward_impl.2} parent=0
    _
  %s11 = ssub.s32 1, %s9
  %s12 = scalar_select 0, %s11, %s9
  // Predicated region
  $region2: #{_forward_impl.2} parent=0 // pred_check
    _
  $region3: #{_forward_impl.2} parent=0 // pred_check_branch
    %14 = sbr.rel (0) target = $region5
  $region4: #{_forward_impl.2} parent=0 // pred_region
    _
  $region5: #{_forward_impl.2} parent=0 // pred_fallthru
    _
  // Predicated region
  $region6: #{_forward_impl.2} parent=0 // pred_check
    _
  $region7: #{_forward_impl.2} parent=0 // pred_check_branch
    %16 = sbr.rel (0) target = $region9
  $region8: #{_forward_impl.2} parent=0 // pred_region
    _
  $region9: #{_forward_impl.2} parent=0 // pred_fallthru
    _
  // Predicated region
  $region10: #{_forward_impl.2} parent=0 // pred_check
    _
  $region11: #{_forward_impl.2} parent=0 // pred_check_branch
    %18 = sbr.rel (0) target = $region13
  $region12: #{_forward_impl.2} parent=0 // pred_region
    _
  $region13: #{_forward_impl.2} parent=0 // pred_fallthru
    _
  // Predicated region
  $region14: #{_forward_impl.2} parent=0 // pred_check
    _
  $region15: #{_forward_impl.2} parent=0 // pred_check_branch
    %20 = sbr.rel (0) target = $region17
  $region16: #{_forward_impl.2} parent=0 // pred_region
    _
  $region17: #{_forward_impl.2} parent=0 // pred_fallthru
    _
  // Predicated region
  $region18: #{_forward_impl.2} parent=0 // pred_check
    _
  $region19: #{_forward_impl.2} parent=0 // pred_check_branch
    %22 = sbr.rel (0) target = $region21
  $region20: #{_forward_impl.2} parent=0 // pred_region
    _
  $region21: #{_forward_impl.2} parent=0 // pred_fallthru
    _
  // Predicated region
  $region22: #{_forward_impl.2} parent=0 // pred_check
    _
  $region23: #{_forward_impl.2} parent=0 // pred_check_branch
    %24 = sbr.rel (0) target = $region25
  $region24: #{_forward_impl.2} parent=0 // pred_region
    _
  $region25: #{_forward_impl.2} parent=0 // pred_fallthru
    _
  // Predicated region
  $region26: #{_forward_impl.2} parent=0 // pred_check
    _
  $region27: #{_forward_impl.2} parent=0 // pred_check_branch
    %26 = sbr.rel (0) target = $region29
  $region28: #{_forward_impl.2} parent=0 // pred_region
    _
  $region29: #{_forward_impl.2} parent=0 // pred_fallthru
    _
  // Predicated region
  $region30: #{_forward_impl.2} parent=0 // pred_check
    _
  $region31: #{_forward_impl.2} parent=0 // pred_check_branch
    %28 = sbr.rel (0) target = $region33
  $region32: #{_forward_impl.2} parent=0 // pred_region
    _
  $region33: #{_forward_impl.2} parent=0 // pred_fallthru
    _
  %v30 = vld [vmem:[%s0] sm:$0xf]
  %v31 = vld [vmem:[%s2] sm:$0xf]
  %v32 = vld [vmem:[%s2 + $0x4] sm:$0xf]
  %v33 = vld [vmem:[%s2 + $0x8] sm:$0xf]
  %v34 = vld [vmem:[%s2 + $0xc] sm:$0xf]
  %v35 = vld [vmem:[%s2 + $0x10] sm:$0xf]
  %v36 = vld [vmem:[%s2 + $0x14] sm:$0xf]
  %v37 = vld [vmem:[%s2 + $0x18] sm:$0xf]
  %v38 = vld [vmem:[%s2 + $0x1c] sm:$0xf]
  %v39 = vld [vmem:[%s1] sm:$0xf]
  %v40 = vunpack.c.l.bf16 %v39
  %v49 = vunpack.c.l.b16 %v31
  %v50 = vunpack.c.l.b16 %v32
  %v51 = vunpack.c.l.b16 %v33
  %v52 = vunpack.c.l.b16 %v34
  %v53 = vunpack.c.l.b16 %v35
  %v54 = vunpack.c.l.b16 %v36
  %v55 = vunpack.c.l.b16 %v37
  %v56 = vunpack.c.l.b16 %v38
  %v57 = vpack.c.b16 %v50, %v49
  %v58 = vpack.c.b16 %v52, %v51
  %v59 = vpack.c.b16 %v54, %v53
  %v60 = vpack.c.b16 %v56, %v55
  %vm65 = vcmask 523264
  %v67 = vsel %vm65, %v30, 0
  %69 = vmatprep.subr.bf16.mxu0 0
  %70 = vmatpush1.bf16.msra.mxu0 %v57
  %71 = vmatprep.subr.bf16.mxu0 0
  %72 = vmatpush1.bf16.msra.mxu0 %v58
  %73 = vmatprep.subr.bf16.mxu0 0
  %74 = vmatpush1.bf16.msra.mxu0 %v59
  %75 = vmatprep.subr.bf16.mxu0 0
  %76 = vmatpush1.bf16.msra.mxu0 %v60
  %77 = vmatprep.subr.bf16.mxu0 0
  %78 = vmatpush1.bf16.msra.mxu0 0
  %79 = vmatprep.subr.bf16.mxu0 0
  %80 = vmatpush1.bf16.msra.mxu0 0
  %81 = vmatprep.subr.bf16.mxu0 0
  %82 = vmatpush1.bf16.msra.mxu0 0
  %83 = vmatprep.subr.bf16.mxu0 0
  %84 = vmatpush1.bf16.msra.mxu0 0
  %85 = vmatprep.subr.bf16.mxu0 0
  %86 = vmatpush1.bf16.msra.mxu0 0
  %87 = vmatprep.subr.bf16.mxu0 0
  %88 = vmatpush1.bf16.msra.mxu0 0
  %89 = vmatprep.subr.bf16.mxu0 0
  %90 = vmatpush1.bf16.msra.mxu0 0
  %91 = vmatprep.subr.bf16.mxu0 0
  %92 = vmatpush1.bf16.msra.mxu0 0
  %93 = vmatprep.subr.bf16.mxu0 0
  %94 = vmatpush1.bf16.msra.mxu0 0
  %95 = vmatprep.subr.bf16.mxu0 0
  %96 = vmatpush1.bf16.msra.mxu0 0
  %97 = vmatprep.subr.bf16.mxu0 0
  %98 = vmatpush1.bf16.msra.mxu0 0
  %99 = vmatprep.subr.bf16.mxu0 0
  %100 = vmatpush1.bf16.msra.mxu0 0
  %101 = vmatprep.mubr.bf16.mxu0 0
  %102 = vmatmul.mubr.bf16.gmra.mrb[0].mxu0 %v67
  %v103 = vpop.f32.mrb[0].mxu0
  %v104 = vadd.f32 %v40, %v103
  %v105 = vpop.f32.mrb[0].mxu0
  %v106 = vpop.f32.mrb[0].mxu0
  %v107 = vpop.f32.mrb[0].mxu0
  %108 = vdwg.mxu0
  %v109 = vpack.c.bf16 %v104, %v104
  %v110 = vld [vmem:[%s3] sm:$0xff]
  %v111 = vld [vmem:[%s3 + $0x8] sm:$0xff]
  %v112 = vld [vmem:[%s3 + $0x10] sm:$0xff]
  %v113 = vld [vmem:[%s3 + $0x18] sm:$0xff]
  %v114 = vld [vmem:[%s3 + $0x20] sm:$0xff]
  %v115 = vld [vmem:[%s3 + $0x28] sm:$0xff]
  %v116 = vld [vmem:[%s3 + $0x30] sm:$0xff]
  %v117 = vld [vmem:[%s3 + $0x38] sm:$0xff]
  %v118 = vld [vmem:[%s3 + $0x40] sm:$0xff]
  %v119 = vld [vmem:[%s3 + $0x48] sm:$0xff]
  %v120 = vld [vmem:[%s3 + $0x50] sm:$0xff]
  %v121 = vld [vmem:[%s3 + $0x58] sm:$0xff]
  %v122 = vld [vmem:[%s3 + $0x60] sm:$0xff]
  %v123 = vld [vmem:[%s3 + $0x68] sm:$0xff]
  %v124 = vld [vmem:[%s3 + $0x70] sm:$0xff]
  %v125 = vld [vmem:[%s3 + $0x78] sm:$0xff]
  %v126 = vld [vmem:[%s4] sm:$0x3]
  %v127 = vunpack.c.l.bf16 %v126
  %v129 = vlaneseq
  %v130 = vshrl.u32 %v129, 7
  %v131 = vsub.s32 0, %v130
  %v132 = vrot.slane %v127, %v131
  %v133 = vlaneseq
  %v134 = vshrl.u32 %v133, 7
  %v135 = vsub.s32 2, %v134
  %v136 = vrot.slane %v127, %v135
  %v139 = vlaneseq
  %v140 = vshrl.u32 %v139, 7
  %v141 = vsub.s32 0, %v140
  %v142 = vrot.slane %v132, %v141
  %v143 = vlaneseq
  %v144 = vshrl.u32 %v143, 7
  %v145 = vsub.s32 0, %v144
  %v146 = vrot.slane %v136, %v145
  %v163 = vunpack.c.l.b16 %v110
  %v164 = vunpack.c.h.b16 %v110
  %v165 = vunpack.c.l.b16 %v111
  %v166 = vunpack.c.h.b16 %v111
  %v167 = vunpack.c.l.b16 %v112
  %v168 = vunpack.c.h.b16 %v112
  %v169 = vunpack.c.l.b16 %v113
  %v170 = vunpack.c.h.b16 %v113
  %v171 = vunpack.c.l.b16 %v114
  %v172 = vunpack.c.h.b16 %v114
  %v173 = vunpack.c.l.b16 %v115
  %v174 = vunpack.c.h.b16 %v115
  %v175 = vunpack.c.l.b16 %v116
  %v176 = vunpack.c.h.b16 %v116
  %v177 = vunpack.c.l.b16 %v117
  %v178 = vunpack.c.h.b16 %v117
  %v179 = vunpack.c.l.b16 %v118
  %v180 = vunpack.c.h.b16 %v118
  %v181 = vunpack.c.l.b16 %v119
  %v182 = vunpack.c.h.b16 %v119
  %v183 = vunpack.c.l.b16 %v120
  %v184 = vunpack.c.h.b16 %v120
  %v185 = vunpack.c.l.b16 %v121
  %v186 = vunpack.c.h.b16 %v121
  %v187 = vunpack.c.l.b16 %v122
  %v188 = vunpack.c.h.b16 %v122
  %v189 = vunpack.c.l.b16 %v123
  %v190 = vunpack.c.h.b16 %v123
  %v191 = vunpack.c.l.b16 %v124
  %v192 = vunpack.c.h.b16 %v124
  %v193 = vunpack.c.l.b16 %v125
  %v194 = vunpack.c.h.b16 %v125
  %v195 = vpack.c.b16 %v165, %v163
  %v196 = vpack.c.b16 %v166, %v164
  %v197 = vpack.c.b16 %v169, %v167
  %v198 = vpack.c.b16 %v170, %v168
  %v199 = vpack.c.b16 %v173, %v171
  %v200 = vpack.c.b16 %v174, %v172
  %v201 = vpack.c.b16 %v177, %v175
  %v202 = vpack.c.b16 %v178, %v176
  %v203 = vpack.c.b16 %v181, %v179
  %v204 = vpack.c.b16 %v182, %v180
  %v205 = vpack.c.b16 %v185, %v183
  %v206 = vpack.c.b16 %v186, %v184
  %v207 = vpack.c.b16 %v189, %v187
  %v208 = vpack.c.b16 %v190, %v188
  %v209 = vpack.c.b16 %v193, %v191
  %v210 = vpack.c.b16 %v194, %v192
  %227 = vmatprep.subr.bf16.mxu0 %v196
  %228 = vmatpush1.bf16.msra.mxu0 %v195
  %229 = vmatprep.subr.bf16.mxu0 %v198
  %230 = vmatpush1.bf16.msra.mxu0 %v197
  %231 = vmatprep.subr.bf16.mxu0 %v200
  %232 = vmatpush1.bf16.msra.mxu0 %v199
  %233 = vmatprep.subr.bf16.mxu0 %v202
  %234 = vmatpush1.bf16.msra.mxu0 %v201
  %235 = vmatprep.subr.bf16.mxu0 %v204
  %236 = vmatpush1.bf16.msra.mxu0 %v203
  %237 = vmatprep.subr.bf16.mxu0 %v206
  %238 = vmatpush1.bf16.msra.mxu0 %v205
  %239 = vmatprep.subr.bf16.mxu0 %v208
  %240 = vmatpush1.bf16.msra.mxu0 %v207
  %241 = vmatprep.subr.bf16.mxu0 %v210
  %242 = vmatpush1.bf16.msra.mxu0 %v209
  %243 = vmatprep.subr.bf16.mxu0 0
  %244 = vmatpush1.bf16.msra.mxu0 0
  %245 = vmatprep.subr.bf16.mxu0 0
  %246 = vmatpush1.bf16.msra.mxu0 0
  %247 = vmatprep.subr.bf16.mxu0 0
  %248 = vmatpush1.bf16.msra.mxu0 0
  %249 = vmatprep.subr.bf16.mxu0 0
  %250 = vmatpush1.bf16.msra.mxu0 0
  %251 = vmatprep.subr.bf16.mxu0 0
  %252 = vmatpush1.bf16.msra.mxu0 0
  %253 = vmatprep.subr.bf16.mxu0 0
  %254 = vmatpush1.bf16.msra.mxu0 0
  %255 = vmatprep.subr.bf16.mxu0 0
  %256 = vmatpush1.bf16.msra.mxu0 0
  %257 = vmatprep.subr.bf16.mxu0 0
  %258 = vmatpush1.bf16.msra.mxu0 0
  %259 = vmatprep.mubr.bf16.mxu0 0
  %260 = vmatmul.mubr.bf16.gmra.mrb[0].mxu0 %v109
  %v261 = vpop.f32.mrb[0].mxu0
  %v262 = vadd.f32 %v142, %v261
  %v263 = vpop.f32.mrb[0].mxu0
  %v264 = vadd.f32 %v146, %v263
  %v265 = vpop.f32.mrb[0].mxu0
  %v266 = vpop.f32.mrb[0].mxu0
  %267 = vdwg.mxu0
  %v268 = vmul.f32 %v262, %v262
  %v269 = vmul.f32 %v264, %v264
  %v270 = vmul.f32 %v262, %v268
  %v271 = vmul.f32 %v264, %v269
  %v272 = vmul.f32 %v270, 0.044715
  %v273 = vmul.f32 %v271, 0.044715
  %v274 = vadd.f32 %v262, %v272
  %v275 = vadd.f32 %v264, %v273
  %v276 = vmul.f32 %v274, 0.7978846
  %v277 = vmul.f32 %v275, 0.7978846
  %v278 = vtanh.pop %v276
  %v279 = vtanh.pop %v277
  %v280 = vadd.f32 %v278, 1.0
  %v281 = vadd.f32 %v279, 1.0
  %v282 = vmul.f32 %v280, 0.5
  %v283 = vmul.f32 %v281, 0.5
  %v284 = vmul.f32 %v262, %v282
  %v285 = vmul.f32 %v264, %v283
  %v286 = vpack.c.bf16 %v284, %v284
  %v287 = vpack.c.bf16 %v285, %v285
  %v288 = vld [vmem:[%s5] sm:$0xf]
  %v289 = vld [vmem:[%s5 + $0x4] sm:$0xf]
  %v290 = vld [vmem:[%s5 + $0x8] sm:$0xf]
  %v291 = vld [vmem:[%s5 + $0xc] sm:$0xf]
  %v292 = vld [vmem:[%s5 + $0x10] sm:$0xf]
  %v293 = vld [vmem:[%s5 + $0x14] sm:$0xf]
  %v294 = vld [vmem:[%s5 + $0x18] sm:$0xf]
  %v295 = vld [vmem:[%s5 + $0x1c] sm:$0xf]
  %v296 = vld [vmem:[%s5 + $0x20] sm:$0xf]
  %v297 = vld [vmem:[%s5 + $0x24] sm:$0xf]
  %v298 = vld [vmem:[%s5 + $0x28] sm:$0xf]
  %v299 = vld [vmem:[%s5 + $0x2c] sm:$0xf]
  %v300 = vld [vmem:[%s5 + $0x30] sm:$0xf]
  %v301 = vld [vmem:[%s5 + $0x34] sm:$0xf]
  %v302 = vld [vmem:[%s5 + $0x38] sm:$0xf]
  %v303 = vld [vmem:[%s5 + $0x3c] sm:$0xf]
  %v304 = vld [vmem:[%s5 + $0x40] sm:$0xf]
  %v305 = vld [vmem:[%s5 + $0x44] sm:$0xf]
  %v306 = vld [vmem:[%s5 + $0x48] sm:$0xf]
  %v307 = vld [vmem:[%s5 + $0x4c] sm:$0xf]
  %v308 = vld [vmem:[%s5 + $0x50] sm:$0xf]
  %v309 = vld [vmem:[%s5 + $0x54] sm:$0xf]
  %v310 = vld [vmem:[%s5 + $0x58] sm:$0xf]
  %v311 = vld [vmem:[%s5 + $0x5c] sm:$0xf]
  %v312 = vld [vmem:[%s5 + $0x60] sm:$0xf]
  %v313 = vld [vmem:[%s5 + $0x64] sm:$0xf]
  %v314 = vld [vmem:[%s5 + $0x68] sm:$0xf]
  %v315 = vld [vmem:[%s5 + $0x6c] sm:$0xf]
  %v316 = vld [vmem:[%s5 + $0x70] sm:$0xf]
  %v317 = vld [vmem:[%s5 + $0x74] sm:$0xf]
  %v318 = vld [vmem:[%s5 + $0x78] sm:$0xf]
  %v319 = vld [vmem:[%s5 + $0x7c] sm:$0xf]
  %v352 = vunpack.c.l.b16 %v288
  %v353 = vunpack.c.l.b16 %v289
  %v354 = vunpack.c.l.b16 %v290
  %v355 = vunpack.c.l.b16 %v291
  %v356 = vunpack.c.l.b16 %v292
  %v357 = vunpack.c.l.b16 %v293
  %v358 = vunpack.c.l.b16 %v294
  %v359 = vunpack.c.l.b16 %v295
  %v360 = vunpack.c.l.b16 %v296
  %v361 = vunpack.c.l.b16 %v297
  %v362 = vunpack.c.l.b16 %v298
  %v363 = vunpack.c.l.b16 %v299
  %v364 = vunpack.c.l.b16 %v300
  %v365 = vunpack.c.l.b16 %v301
  %v366 = vunpack.c.l.b16 %v302
  %v367 = vunpack.c.l.b16 %v303
  %v368 = vunpack.c.l.b16 %v304
  %v369 = vunpack.c.l.b16 %v305
  %v370 = vunpack.c.l.b16 %v306
  %v371 = vunpack.c.l.b16 %v307
  %v372 = vunpack.c.l.b16 %v308
  %v373 = vunpack.c.l.b16 %v309
  %v374 = vunpack.c.l.b16 %v310
  %v375 = vunpack.c.l.b16 %v311
  %v376 = vunpack.c.l.b16 %v312
  %v377 = vunpack.c.l.b16 %v313
  %v378 = vunpack.c.l.b16 %v314
  %v379 = vunpack.c.l.b16 %v315
  %v380 = vunpack.c.l.b16 %v316
  %v381 = vunpack.c.l.b16 %v317
  %v382 = vunpack.c.l.b16 %v318
  %v383 = vunpack.c.l.b16 %v319
  %v384 = vpack.c.b16 %v353, %v352
  %v385 = vpack.c.b16 %v355, %v354
  %v386 = vpack.c.b16 %v357, %v356
  %v387 = vpack.c.b16 %v359, %v358
  %v388 = vpack.c.b16 %v361, %v360
  %v389 = vpack.c.b16 %v363, %v362
  %v390 = vpack.c.b16 %v365, %v364
  %v391 = vpack.c.b16 %v367, %v366
  %v392 = vpack.c.b16 %v369, %v368
  %v393 = vpack.c.b16 %v371, %v370
  %v394 = vpack.c.b16 %v373, %v372
  %v395 = vpack.c.b16 %v375, %v374
  %v396 = vpack.c.b16 %v377, %v376
  %v397 = vpack.c.b16 %v379, %v378
  %v398 = vpack.c.b16 %v381, %v380
  %v399 = vpack.c.b16 %v383, %v382
  %416 = vmatprep.subr.bf16.mxu0 0
  %417 = vmatpush1.bf16.msra.mxu0 %v384
  %418 = vmatprep.subr.bf16.mxu0 0
  %419 = vmatpush1.bf16.msra.mxu0 %v385
  %420 = vmatprep.subr.bf16.mxu0 0
  %421 = vmatpush1.bf16.msra.mxu0 %v386
  %422 = vmatprep.subr.bf16.mxu0 0
  %423 = vmatpush1.bf16.msra.mxu0 %v387
  %424 = vmatprep.subr.bf16.mxu0 0
  %425 = vmatpush1.bf16.msra.mxu0 %v388
  %426 = vmatprep.subr.bf16.mxu0 0
  %427 = vmatpush1.bf16.msra.mxu0 %v389
  %428 = vmatprep.subr.bf16.mxu0 0
  %429 = vmatpush1.bf16.msra.mxu0 %v390
  %430 = vmatprep.subr.bf16.mxu0 0
  %431 = vmatpush1.bf16.msra.mxu0 %v391
  %432 = vmatprep.subr.bf16.mxu0 0
  %433 = vmatpush1.bf16.msra.mxu0 %v392
  %434 = vmatprep.subr.bf16.mxu0 0
  %435 = vmatpush1.bf16.msra.mxu0 %v393
  %436 = vmatprep.subr.bf16.mxu0 0
  %437 = vmatpush1.bf16.msra.mxu0 %v394
  %438 = vmatprep.subr.bf16.mxu0 0
  %439 = vmatpush1.bf16.msra.mxu0 %v395
  %440 = vmatprep.subr.bf16.mxu0 0
  %441 = vmatpush1.bf16.msra.mxu0 %v396
  %442 = vmatprep.subr.bf16.mxu0 0
  %443 = vmatpush1.bf16.msra.mxu0 %v397
  %444 = vmatprep.subr.bf16.mxu0 0
  %445 = vmatpush1.bf16.msra.mxu0 %v398
  %446 = vmatprep.subr.bf16.mxu0 0
  %447 = vmatpush1.bf16.msra.mxu0 %v399
  %448 = vmatprep.mubr.bf16.mxu0 %v287
  %449 = vmatmul.mubr.bf16.gmra.mrb[0].mxu0 %v286
  %v450 = vpop.f32.mrb[0].mxu0
  %v451 = vadd.f32 0.0, %v450
  %v452 = vpop.f32.mrb[0].mxu0
  %v453 = vpop.f32.mrb[0].mxu0
  %v454 = vpop.f32.mrb[0].mxu0
  %455 = vdwg.mxu0
  %v456 = vadd.f32 %v104, %v451
  %v457 = vpack.c.bf16 %v456, %v456
  %v458 = vld [vmem:[%s6] sm:$0xf]
  %v459 = vld [vmem:[%s6 + $0x4] sm:$0xf]
  %v460 = vld [vmem:[%s6 + $0x8] sm:$0xf]
  %v461 = vld [vmem:[%s6 + $0xc] sm:$0xf]
  %v462 = vld [vmem:[%s6 + $0x10] sm:$0xf]
  %v463 = vld [vmem:[%s6 + $0x14] sm:$0xf]
  %v464 = vld [vmem:[%s6 + $0x18] sm:$0xf]
  %v465 = vld [vmem:[%s6 + $0x1c] sm:$0xf]
  %v466 = vld [vmem:[%s6 + $0x20] sm:$0xf]
  %v467 = vld [vmem:[%s6 + $0x24] sm:$0xf]
  %v468 = vld [vmem:[%s6 + $0x28] sm:$0xf]
  %v469 = vld [vmem:[%s6 + $0x2c] sm:$0xf]
  %v470 = vld [vmem:[%s6 + $0x30] sm:$0xf]
  %v471 = vld [vmem:[%s6 + $0x34] sm:$0xf]
  %v472 = vld [vmem:[%s6 + $0x38] sm:$0xf]
  %v473 = vld [vmem:[%s6 + $0x3c] sm:$0xf]
  %v474 = vld [vmem:[%s7] sm:$0x1]
  %v475 = vunpack.c.l.bf16 %v474
  %v476 = vlaneseq
  %v477 = vshrl.u32 %v476, 7
  %v478 = vsub.s32 0, %v477
  %v479 = vrot.slane %v475, %v478
  %v496 = vunpack.c.l.b16 %v458
  %v497 = vunpack.c.l.b16 %v459
  %v498 = vunpack.c.l.b16 %v460
  %v499 = vunpack.c.l.b16 %v461
  %v500 = vunpack.c.l.b16 %v462
  %v501 = vunpack.c.l.b16 %v463
  %v502 = vunpack.c.l.b16 %v464
  %v503 = vunpack.c.l.b16 %v465
  %v504 = vunpack.c.l.b16 %v466
  %v505 = vunpack.c.l.b16 %v467
  %v506 = vunpack.c.l.b16 %v468
  %v507 = vunpack.c.l.b16 %v469
  %v508 = vunpack.c.l.b16 %v470
  %v509 = vunpack.c.l.b16 %v471
  %v510 = vunpack.c.l.b16 %v472
  %v511 = vunpack.c.l.b16 %v473
  %v512 = vpack.c.b16 %v497, %v496
  %v513 = vpack.c.b16 %v499, %v498
  %v514 = vpack.c.b16 %v501, %v500
  %v515 = vpack.c.b16 %v503, %v502
  %v516 = vpack.c.b16 %v505, %v504
  %v517 = vpack.c.b16 %v507, %v506
  %v518 = vpack.c.b16 %v509, %v508
  %v519 = vpack.c.b16 %v511, %v510
  %528 = vmatprep.subr.bf16.mxu0 0
  %529 = vmatpush1.bf16.msra.mxu0 %v512
  %530 = vmatprep.subr.bf16.mxu0 0
  %531 = vmatpush1.bf16.msra.mxu0 %v513
  %532 = vmatprep.subr.bf16.mxu0 0
  %533 = vmatpush1.bf16.msra.mxu0 %v514
  %534 = vmatprep.subr.bf16.mxu0 0
  %535 = vmatpush1.bf16.msra.mxu0 %v515
  %536 = vmatprep.subr.bf16.mxu0 0
  %537 = vmatpush1.bf16.msra.mxu0 %v516
  %538 = vmatprep.subr.bf16.mxu0 0
  %539 = vmatpush1.bf16.msra.mxu0 %v517
  %540 = vmatprep.subr.bf16.mxu0 0
  %541 = vmatpush1.bf16.msra.mxu0 %v518
  %542 = vmatprep.subr.bf16.mxu0 0
  %543 = vmatpush1.bf16.msra.mxu0 %v519
  %544 = vmatprep.subr.bf16.mxu0 0
  %545 = vmatpush1.bf16.msra.mxu0 0
  %546 = vmatprep.subr.bf16.mxu0 0
  %547 = vmatpush1.bf16.msra.mxu0 0
  %548 = vmatprep.subr.bf16.mxu0 0
  %549 = vmatpush1.bf16.msra.mxu0 0
  %550 = vmatprep.subr.bf16.mxu0 0
  %551 = vmatpush1.bf16.msra.mxu0 0
  %552 = vmatprep.subr.bf16.mxu0 0
  %553 = vmatpush1.bf16.msra.mxu0 0
  %554 = vmatprep.subr.bf16.mxu0 0
  %555 = vmatpush1.bf16.msra.mxu0 0
  %556 = vmatprep.subr.bf16.mxu0 0
  %557 = vmatpush1.bf16.msra.mxu0 0
  %558 = vmatprep.subr.bf16.mxu0 0
  %559 = vmatpush1.bf16.msra.mxu0 0
  %560 = vmatprep.mubr.bf16.mxu0 0
  %561 = vmatmul.mubr.bf16.gmra.mrb[0].mxu0 %v457
  %v562 = vpop.f32.mrb[0].mxu0
  %v563 = vadd.f32 %v479, %v562
  %v564 = vpop.f32.mrb[0].mxu0
  %v565 = vpop.f32.mrb[0].mxu0
  %v566 = vpop.f32.mrb[0].mxu0
  %567 = vdwg.mxu0
  %v568 = vpack.c.bf16 %v563, %v563
  %569 = vst [vmem:[%s8] sm:$0xf] %v568
  // Predicated region
  $region34: #{_forward_impl.2} parent=0 // pred_check
    _
  $region35: #{_forward_impl.2} parent=0 // pred_check_branch
    %571 = sbr.rel (0) target = $region37
  $region36: #{_forward_impl.2} parent=0 // pred_region
    _
  $region37: #{_forward_impl.2} parent=0 // pred_fallthru
    _
  // Predicated region
  $region38: #{_forward_impl.2} parent=0 // pred_check
    _
  $region39: #{_forward_impl.2} parent=0 // pred_check_branch
    %573 = sbr.rel (0) target = $region41
  $region40: #{_forward_impl.2} parent=0 // pred_region
    _
  $region41: #{_forward_impl.2} parent=0 // pred_fallthru
    _

// kernel: _forward_impl.3
$region0: #{_forward_impl.3}
  #allocation0 [shape = 'u32[]', space=smem, size = 0x4, offset = 0x4, fixed_abs, tag = 'smem constant byte address 0x4 - core index']
  #allocation1 [shape = 'u32[144,128]{1,0:T(1,128)}', space=vmem, size = 0x12000, scoped, tag = 'internal scratch']
  %s0 = inlined_call_operand.vmem [shape: bf16[2,16,128], index: 0, kind: input, shape index: {}]
  %s1 = inlined_call_operand.vmem [shape: bf16[16,128], index: 1, kind: input, shape index: {}]
  %s2 = inlined_call_operand.vmem [shape: bf16[128,256], index: 2, kind: input, shape index: {}]
  %s3 = inlined_call_operand.vmem [shape: bf16[1,256], index: 3, kind: input, shape index: {}]
  %s4 = inlined_call_operand.vmem [shape: bf16[256,128], index: 4, kind: input, shape index: {}]
  %s5 = inlined_call_operand.vmem [shape: bf16[128,128], index: 5, kind: input, shape index: {}]
  %s6 = inlined_call_operand.vmem [shape: bf16[1,128], index: 6, kind: input, shape index: {}]
  %s7 = inlined_call_operand.vmem [shape: bf16[2,16,128], index: 7, kind: output, shape index: {}]
  %s8 = sld [smem:[#allocation0]]
  $region61: #{_forward_impl.3} parent=0
    _
  %s10 = ssub.s32 1, %s8
  %s11 = scalar_select 0, %s10, %s8
  loop: start=0, step=1, limit=4
  $region2: #{_forward_impl.3} parent=0 // loop_pre_header
    _
  $region3: #{_forward_impl.3} parent=0 // loop_header
    %s13 = sphi 0, %s17
    %p14 = scmp.ge.s32.totalorder %s13, 4
    %s20 = sphi 0, %s32
    %s21 = sphi 0, %s28
    %s22 = sphi 0, %s20
    %s23 = sphi 0, %s21
    %s24 = sphi 0, %s22
    %s25 = sphi 0, %s23
    %s37 = sphi 0, %s39
    %s40 = sphi 0, %s37
    %s41 = sphi 0, %s40
    %s57 = sphi 0, %s41
    %s63 = sphi 0, %s65
    %s66 = sphi 0, %s63
    %s67 = sphi 0, %s66
    %s83 = sphi 0, %s67
    %s87 = sphi 0, %s87
    %s89 = sphi 0, %s87
    %s90 = sphi 0, %s89
    %s104 = sphi 0, %s90
    %s108 = sphi 0, %s108
    %s110 = sphi 0, %s108
    %s111 = sphi 0, %s110
    %s125 = sphi 0, %s111
    %s129 = sphi 0, %s129
    %s131 = sphi 0, %s129
    %s132 = sphi 0, %s131
    %s146 = sphi 0, %s132
    %s150 = sphi 0, %s150
    %s152 = sphi 0, %s150
    %s153 = sphi 0, %s152
    %s167 = sphi 0, %s153
    %s171 = sphi 0, %s171
    %s173 = sphi 0, %s171
    %s174 = sphi 0, %s173
    %s188 = sphi 0, %s174
    %s196 = sphi 0, %s198
    %s199 = sphi 0, %s196
    %s200 = sphi 0, %s199
    %s216 = sphi 0, %s200
  $region4: #{_forward_impl.3} parent=0 // loop_header_branch
    %16 = sbr.rel (%p14) target = $region8
  $region5: #{_forward_impl.3} parent=0 // loop_body
    %s18 = ssub.s32 %s13, 1
    %s19 = ssub.s32 %s13, 2
    %s26 = sadd.s32 1, %s21
    %p27 = scmp.ge.s32.totalorder %s26, 2
    %s28 = scalar_select %p27, 0, %s26
    %s29 = sadd.s32 1, %s20
    %s30 = scalar_select %p27, %s29, %s20
    %p31 = scmp.ge.s32.totalorder %s30, 1
    %s32 = scalar_select %p31, 0, %s30
    %s33 = ssub.s32 %s21, %s28
    %s34 = ssub.s32 %s20, %s32
    %s35 = sor.u32 %s33, %s34
    %p36 = scmp.eq.s32.totalorder %s35, 0
    %s38 = sadd.s32 %s37, 1
    %s39 = scalar_select %p36, %s37, %s38
    %p42 = pneg %p36
    %p43 = scmp.eq.s32.totalorder %s13, 1
    %p44 = por %p42, %p43
    %p45 = scmp.ne.s32.totalorder %s37, %s40
    %p46 = scmp.eq.s32.totalorder %s13, 0
    %p47 = por %p45, %p46
    %p48 = scmp.ne.s32.totalorder %s37, %s40
    %p49 = scmp.eq.s32.totalorder %s18, 1
    %p50 = por %p48, %p49
    %p51 = scmp.ne.s32.totalorder %s40, %s41
    %p52 = scmp.eq.s32.totalorder %s18, 0
    %p53 = por %p51, %p52
    %p54 = scmp.ne.s32.totalorder %s40, %s41
    %p55 = scmp.eq.s32.totalorder %s19, 1
    %p56 = por %p54, %p55
    %p58 = scmp.ne.s32.totalorder %s41, %s57
    %p59 = scmp.eq.s32.totalorder %s19, 0
    %p60 = por %p58, %p59
    %s61 = ssub.s32 %s20, %s32
    %p62 = scmp.eq.s32.totalorder %s61, 0
    %s64 = sadd.s32 %s63, 1
    %s65 = scalar_select %p62, %s63, %s64
    %p68 = pneg %p62
    %p69 = scmp.eq.s32.totalorder %s13, 1
    %p70 = por %p68, %p69
    %p71 = scmp.ne.s32.totalorder %s63, %s66
    %p72 = scmp.eq.s32.totalorder %s13, 0
    %p73 = por %p71, %p72
    %p74 = scmp.ne.s32.totalorder %s63, %s66
    %p75 = scmp.eq.s32.totalorder %s18, 1
    %p76 = por %p74, %p75
    %p77 = scmp.ne.s32.totalorder %s66, %s67
    %p78 = scmp.eq.s32.totalorder %s18, 0
    %p79 = por %p77, %p78
    %p80 = scmp.ne.s32.totalorder %s66, %s67
    %p81 = scmp.eq.s32.totalorder %s19, 1
    %p82 = por %p80, %p81
    %p84 = scmp.ne.s32.totalorder %s67, %s83
    %p85 = scmp.eq.s32.totalorder %s19, 0
    %p86 = por %p84, %p85
    %s88 = sadd.s32 %s87, 1
    %p91 = scmp.eq.s32.totalorder %s13, 1
    %p92 = scmp.ne.s32.totalorder %s87, %s89
    %p93 = scmp.eq.s32.totalorder %s13, 0
    %p94 = por %p92, %p93
    %p95 = scmp.ne.s32.totalorder %s87, %s89
    %p96 = scmp.eq.s32.totalorder %s18, 1
    %p97 = por %p95, %p96
    %p98 = scmp.ne.s32.totalorder %s89, %s90
    %p99 = scmp.eq.s32.totalorder %s18, 0
    %p100 = por %p98, %p99
    %p101 = scmp.ne.s32.totalorder %s89, %s90
    %p102 = scmp.eq.s32.totalorder %s19, 1
    %p103 = por %p101, %p102
    %p105 = scmp.ne.s32.totalorder %s90, %s104
    %p106 = scmp.eq.s32.totalorder %s19, 0
    %p107 = por %p105, %p106
    %s109 = sadd.s32 %s108, 1
    %p112 = scmp.eq.s32.totalorder %s13, 1
    %p113 = scmp.ne.s32.totalorder %s108, %s110
    %p114 = scmp.eq.s32.totalorder %s13, 0
    %p115 = por %p113, %p114
    %p116 = scmp.ne.s32.totalorder %s108, %s110
    %p117 = scmp.eq.s32.totalorder %s18, 1
    %p118 = por %p116, %p117
    %p119 = scmp.ne.s32.totalorder %s110, %s111
    %p120 = scmp.eq.s32.totalorder %s18, 0
    %p121 = por %p119, %p120
    %p122 = scmp.ne.s32.totalorder %s110, %s111
    %p123 = scmp.eq.s32.totalorder %s19, 1
    %p124 = por %p122, %p123
    %p126 = scmp.ne.s32.totalorder %s111, %s125
    %p127 = scmp.eq.s32.totalorder %s19, 0
    %p128 = por %p126, %p127
    %s130 = sadd.s32 %s129, 1
    %p133 = scmp.eq.s32.totalorder %s13, 1
    %p134 = scmp.ne.s32.totalorder %s129, %s131
    %p135 = scmp.eq.s32.totalorder %s13, 0
    %p136 = por %p134, %p135
    %p137 = scmp.ne.s32.totalorder %s129, %s131
    %p138 = scmp.eq.s32.totalorder %s18, 1
    %p139 = por %p137, %p138
    %p140 = scmp.ne.s32.totalorder %s131, %s132
    %p141 = scmp.eq.s32.totalorder %s18, 0
    %p142 = por %p140, %p141
    %p143 = scmp.ne.s32.totalorder %s131, %s132
    %p144 = scmp.eq.s32.totalorder %s19, 1
    %p145 = por %p143, %p144
    %p147 = scmp.ne.s32.totalorder %s132, %s146
    %p148 = scmp.eq.s32.totalorder %s19, 0
    %p149 = por %p147, %p148
    %s151 = sadd.s32 %s150, 1
    %p154 = scmp.eq.s32.totalorder %s13, 1
    %p155 = scmp.ne.s32.totalorder %s150, %s152
    %p156 = scmp.eq.s32.totalorder %s13, 0
    %p157 = por %p155, %p156
    %p158 = scmp.ne.s32.totalorder %s150, %s152
    %p159 = scmp.eq.s32.totalorder %s18, 1
    %p160 = por %p158, %p159
    %p161 = scmp.ne.s32.totalorder %s152, %s153
    %p162 = scmp.eq.s32.totalorder %s18, 0
    %p163 = por %p161, %p162
    %p164 = scmp.ne.s32.totalorder %s152, %s153
    %p165 = scmp.eq.s32.totalorder %s19, 1
    %p166 = por %p164, %p165
    %p168 = scmp.ne.s32.totalorder %s153, %s167
    %p169 = scmp.eq.s32.totalorder %s19, 0
    %p170 = por %p168, %p169
    %s172 = sadd.s32 %s171, 1
    %p175 = scmp.eq.s32.totalorder %s13, 1
    %p176 = scmp.ne.s32.totalorder %s171, %s173
    %p177 = scmp.eq.s32.totalorder %s13, 0
    %p178 = por %p176, %p177
    %p179 = scmp.ne.s32.totalorder %s171, %s173
    %p180 = scmp.eq.s32.totalorder %s18, 1
    %p181 = por %p179, %p180
    %p182 = scmp.ne.s32.totalorder %s173, %s174
    %p183 = scmp.eq.s32.totalorder %s18, 0
    %p184 = por %p182, %p183
    %p185 = scmp.ne.s32.totalorder %s173, %s174
    %p186 = scmp.eq.s32.totalorder %s19, 1
    %p187 = por %p185, %p186
    %p189 = scmp.ne.s32.totalorder %s174, %s188
    %p190 = scmp.eq.s32.totalorder %s19, 0
    %p191 = por %p189, %p190
    %s192 = ssub.s32 %s21, %s28
    %s193 = ssub.s32 %s20, %s32
    %s194 = sor.u32 %s192, %s193
    %p195 = scmp.eq.s32.totalorder %s194, 0
    %s197 = sadd.s32 %s196, 1
    %s198 = scalar_select %p195, %s196, %s197
    %p201 = pneg %p195
    %p202 = scmp.eq.s32.totalorder %s13, 1
    %p203 = por %p201, %p202
    %p204 = scmp.ne.s32.totalorder %s196, %s199
    %p205 = scmp.eq.s32.totalorder %s13, 0
    %p206 = por %p204, %p205
    %p207 = scmp.ne.s32.totalorder %s196, %s199
    %p208 = scmp.eq.s32.totalorder %s18, 1
    %p209 = por %p207, %p208
    %p210 = scmp.ne.s32.totalorder %s199, %s200
    %p211 = scmp.eq.s32.totalorder %s18, 0
    %p212 = por %p210, %p211
    %p213 = scmp.ne.s32.totalorder %s199, %s200
    %p214 = scmp.eq.s32.totalorder %s19, 1
    %p215 = por %p213, %p214
    %p217 = scmp.ne.s32.totalorder %s200, %s216
    %p218 = scmp.eq.s32.totalorder %s19, 0
    %p219 = por %p217, %p218
    %p220 = scmp.le.s32.totalorder 1, %s13
    %p221 = scmp.lt.s32.totalorder %s13, 3
    %p222 = pnand %p220, %p221
    %p223 = pneg %p222
    // Predicated region
    $region9: #{_forward_impl.3} parent=5 // pred_check
      _
    $region10: #{_forward_impl.3} parent=5 // pred_check_branch
      %225 = sbr.rel (%p222) target = $region12
    $region11: #{_forward_impl.3} parent=5 // pred_region
      %s226 = ssub.s32 %s13, 1
      // Predicated region
      $region13: #{_forward_impl.3} parent=11 // pred_check
        %p227 = pneg %p79
      $region14: #{_forward_impl.3} parent=11 // pred_check_branch
        %229 = sbr.rel (%p227) target = $region16
      $region15: #{_forward_impl.3} parent=11 // pred_region
        %s230 = smul.u32 2, %s22
        %p231 = scmp.lt.s32.totalorder %s230, 1
        %s232 = scalar_select %p231, %s230, 1
        %s233 = smul.addr %s232, 4
        %s234 = scalar_lea.vmem %s1, %s233
        %s235 = smul.u32 2, %s22
      $region16: #{_forward_impl.3} parent=11 // pred_fallthru
        _
      // Predicated region
      $region17: #{_forward_impl.3} parent=11 // pred_check
        %p236 = pneg %p100
      $region18: #{_forward_impl.3} parent=11 // pred_check_branch
        %238 = sbr.rel (%p236) target = $region20
      $region19: #{_forward_impl.3} parent=11 // pred_region
        _
      $region20: #{_forward_impl.3} parent=11 // pred_fallthru
        _
      // Predicated region
      $region21: #{_forward_impl.3} parent=11 // pred_check
        %p239 = pneg %p121
      $region22: #{_forward_impl.3} parent=11 // pred_check_branch
        %241 = sbr.rel (%p239) target = $region24
      $region23: #{_forward_impl.3} parent=11 // pred_region
        _
      $region24: #{_forward_impl.3} parent=11 // pred_fallthru
        _
      // Predicated region
      $region25: #{_forward_impl.3} parent=11 // pred_check
        %p242 = pneg %p142
      $region26: #{_forward_impl.3} parent=11 // pred_check_branch
        %244 = sbr.rel (%p242) target = $region28
      $region27: #{_forward_impl.3} parent=11 // pred_region
        _
      $region28: #{_forward_impl.3} parent=11 // pred_fallthru
        _
      // Predicated region
      $region29: #{_forward_impl.3} parent=11 // pred_check
        %p245 = pneg %p163
      $region30: #{_forward_impl.3} parent=11 // pred_check_branch
        %247 = sbr.rel (%p245) target = $region32
      $region31: #{_forward_impl.3} parent=11 // pred_region
        _
      $region32: #{_forward_impl.3} parent=11 // pred_fallthru
        _
      // Predicated region
      $region33: #{_forward_impl.3} parent=11 // pred_check
        %p248 = pneg %p184
      $region34: #{_forward_impl.3} parent=11 // pred_check_branch
        %250 = sbr.rel (%p248) target = $region36
      $region35: #{_forward_impl.3} parent=11 // pred_region
        _
      $region36: #{_forward_impl.3} parent=11 // pred_fallthru
        _
    $region12: #{_forward_impl.3} parent=5 // pred_fallthru
      _
    %p251 = scmp.lt.s32.totalorder %s13, 2
    // Predicated region
    $region37: #{_forward_impl.3} parent=5 // pred_check
      %p252 = pneg %p251
    $region38: #{_forward_impl.3} parent=5 // pred_check_branch
      %254 = sbr.rel (%p252) target = $region40
    $region39: #{_forward_impl.3} parent=5 // pred_region
      // Predicated region
      $region41: #{_forward_impl.3} parent=39 // pred_check
        %p255 = pneg %p47
      $region42: #{_forward_impl.3} parent=39 // pred_check_branch
        %257 = sbr.rel (%p255) target = $region44
      $region43: #{_forward_impl.3} parent=39 // pred_region
        %s258 = smul.u32 2, %s20
        %p259 = scmp.lt.s32.totalorder %s21, 1
        %s260 = scalar_select %p259, %s21, 1
        %p261 = scmp.lt.s32.totalorder %s258, 1
        %s262 = scalar_select %p261, %s258, 1
        %s263 = smul.addr %s260, 2
        %s264 = sadd.s32 %s262, %s263
        %s265 = smul.addr %s264, 4
        %s266 = scalar_lea.vmem %s0, %s265
        %s267 = smul.u32 2, %s20
      $region44: #{_forward_impl.3} parent=39 // pred_fallthru
        _
    $region40: #{_forward_impl.3} parent=5 // pred_fallthru
      _
    %p268 = scmp.le.s32.totalorder 1, %s13
    %p269 = scmp.lt.s32.totalorder %s13, 3
    %p270 = pnand %p268, %p269
    %p271 = pneg %p270
    // Predicated region
    $region45: #{_forward_impl.3} parent=5 // pred_check
      _
    $region46: #{_forward_impl.3} parent=5 // pred_check_branch
      %273 = sbr.rel (%p270) target = $region48
    $region47: #{_forward_impl.3} parent=5 // pred_region
      %s274 = ssub.s32 %s13, 1
      %s275 = smul.u32 2, %s22
      %p276 = scmp.lt.s32.totalorder %s23, 1
      %s277 = scalar_select %p276, %s23, 1
      %p278 = scmp.lt.s32.totalorder %s275, 1
      %s279 = scalar_select %p278, %s275, 1
      %s280 = smul.addr %s277, 2
      %s281 = sadd.s32 %s279, %s280
      %s282 = smul.addr %s281, 4
      %s283 = scalar_lea.vmem %s0, %s282
      %p284 = pneg %p53
      %p285 = pneg %p50
      %s286 = smul.u32 2, %s22
      %p287 = scmp.lt.s32.totalorder %s286, 1
      %s288 = scalar_select %p287, %s286, 1
      %s289 = smul.addr %s288, 4
      %s290 = scalar_lea.vmem %s1, %s289
      %p291 = pneg %p79
      %p292 = pneg %p76
      %p293 = pneg %p100
      %p294 = pneg %p97
      %p295 = pneg %p121
      %p296 = pneg %p118
      %p297 = pneg %p142
      %p298 = pneg %p139
      %p299 = pneg %p163
      %p300 = pneg %p160
      %p301 = pneg %p184
      %p302 = pneg %p181
      %p303 = pneg %p212
      %p304 = pneg %p209
      %s305 = smul.u32 2, %s22
      %p306 = scmp.lt.s32.totalorder %s23, 1
      %s307 = scalar_select %p306, %s23, 1
      %p308 = scmp.lt.s32.totalorder %s305, 1
      %s309 = scalar_select %p308, %s305, 1
      %s310 = smul.addr %s307, 2
      %s311 = sadd.s32 %s309, %s310
      %s312 = smul.addr %s311, 4
      %s313 = scalar_lea.vmem %s7, %s312
      %s314 = smul.u32 2, %s22
      %p315 = scmp.lt.s32.totalorder %s23, 1
      %s316 = scalar_select %p315, %s23, 1
      %p317 = scmp.lt.s32.totalorder %s314, 1
      %s318 = scalar_select %p317, %s314, 1
      %s319 = smul.addr %s316, 2
      %s320 = sadd.s32 %s318, %s319
      %s321 = smul.addr %s320, 4
      %s322 = scalar_lea.vmem %s0, %s321
      %s323 = smul.u32 2, %s22
      %s324 = smul.u32 2, %s22
      %p325 = scmp.lt.s32.totalorder %s324, 1
      %s326 = scalar_select %p325, %s324, 1
      %s327 = smul.addr %s326, 4
      %s328 = scalar_lea.vmem %s1, %s327
      %s329 = smul.u32 2, %s22
      %s330 = smul.u32 2, %s22
      %p331 = scmp.lt.s32.totalorder %s23, 1
      %s332 = scalar_select %p331, %s23, 1
      %p333 = scmp.lt.s32.totalorder %s330, 1
      %s334 = scalar_select %p333, %s330, 1
      %s335 = smul.addr %s332, 2
      %s336 = sadd.s32 %s334, %s335
      %s337 = smul.addr %s336, 4
      %s338 = scalar_lea.vmem %s7, %s337
      %s339 = smul.u32 2, %s22
      %v341 = vld [vmem:[%s322] sm:$0xf]
      %v342 = vld [vmem:[%s322 + $0x4] sm:$0xf]
      %v343 = vunpack.c.l.bf16 %v341
      %v344 = vunpack.c.l.bf16 %v342
      %v345 = vld [vmem:[%s328] sm:$0xf]
      %v346 = vld [vmem:[%s328 + $0x4] sm:$0xf]
      %v347 = vunpack.c.l.bf16 %v345
      %v348 = vunpack.c.l.bf16 %v346
      %v349 = vadd.f32 %v343, %v347
      %v350 = vadd.f32 %v344, %v348
      %v351 = vpack.c.bf16 %v350, %v349
      %v352 = vld [vmem:[%s2] sm:$0xff]
      %v353 = vld [vmem:[%s2 + $0x8] sm:$0xff]
      %v354 = vld [vmem:[%s2 + $0x10] sm:$0xff]
      %v355 = vld [vmem:[%s2 + $0x18] sm:$0xff]
      %v356 = vld [vmem:[%s2 + $0x20] sm:$0xff]
      %v357 = vld [vmem:[%s2 + $0x28] sm:$0xff]
      %v358 = vld [vmem:[%s2 + $0x30] sm:$0xff]
      %v359 = vld [vmem:[%s2 + $0x38] sm:$0xff]
      %v360 = vld [vmem:[%s2 + $0x40] sm:$0xff]
      %v361 = vld [vmem:[%s2 + $0x48] sm:$0xff]
      %v362 = vld [vmem:[%s2 + $0x50] sm:$0xff]
      %v363 = vld [vmem:[%s2 + $0x58] sm:$0xff]
      %v364 = vld [vmem:[%s2 + $0x60] sm:$0xff]
      %v365 = vld [vmem:[%s2 + $0x68] sm:$0xff]
      %v366 = vld [vmem:[%s2 + $0x70] sm:$0xff]
      %v367 = vld [vmem:[%s2 + $0x78] sm:$0xff]
      %v368 = vld [vmem:[%s3] sm:$0x3]
      %v369 = vunpack.c.l.bf16 %v368
      %v371 = vlaneseq
      %v372 = vshrl.u32 %v371, 7
      %v373 = vsub.s32 0, %v372
      %v374 = vrot.slane %v369, %v373
      %v375 = vlaneseq
      %v376 = vshrl.u32 %v375, 7
      %v377 = vsub.s32 2, %v376
      %v378 = vrot.slane %v369, %v377
      %v381 = vlaneseq
      %v382 = vshrl.u32 %v381, 7
      %v383 = vsub.s32 0, %v382
      %v384 = vrot.slane %v374, %v383
      %v385 = vlaneseq
      %v386 = vshrl.u32 %v385, 7
      %v387 = vsub.s32 0, %v386
      %v388 = vrot.slane %v378, %v387
      %v405 = vunpack.c.l.b16 %v352
      %v406 = vunpack.c.h.b16 %v352
      %v407 = vunpack.c.l.b16 %v353
      %v408 = vunpack.c.h.b16 %v353
      %v409 = vunpack.c.l.b16 %v354
      %v410 = vunpack.c.h.b16 %v354
      %v411 = vunpack.c.l.b16 %v355
      %v412 = vunpack.c.h.b16 %v355
      %v413 = vunpack.c.l.b16 %v356
      %v414 = vunpack.c.h.b16 %v356
      %v415 = vunpack.c.l.b16 %v357
      %v416 = vunpack.c.h.b16 %v357
      %v417 = vunpack.c.l.b16 %v358
      %v418 = vunpack.c.h.b16 %v358
      %v419 = vunpack.c.l.b16 %v359
      %v420 = vunpack.c.h.b16 %v359
      %v421 = vunpack.c.l.b16 %v360
      %v422 = vunpack.c.h.b16 %v360
      %v423 = vunpack.c.l.b16 %v361
      %v424 = vunpack.c.h.b16 %v361
      %v425 = vunpack.c.l.b16 %v362
      %v426 = vunpack.c.h.b16 %v362
      %v427 = vunpack.c.l.b16 %v363
      %v428 = vunpack.c.h.b16 %v363
      %v429 = vunpack.c.l.b16 %v364
      %v430 = vunpack.c.h.b16 %v364
      %v431 = vunpack.c.l.b16 %v365
      %v432 = vunpack.c.h.b16 %v365
      %v433 = vunpack.c.l.b16 %v366
      %v434 = vunpack.c.h.b16 %v366
      %v435 = vunpack.c.l.b16 %v367
      %v436 = vunpack.c.h.b16 %v367
      %v437 = vpack.c.b16 %v407, %v405
      %v438 = vpack.c.b16 %v408, %v406
      %v439 = vpack.c.b16 %v411, %v409
      %v440 = vpack.c.b16 %v412, %v410
      %v441 = vpack.c.b16 %v415, %v413
      %v442 = vpack.c.b16 %v416, %v414
      %v443 = vpack.c.b16 %v419, %v417
      %v444 = vpack.c.b16 %v420, %v418
      %v445 = vpack.c.b16 %v423, %v421
      %v446 = vpack.c.b16 %v424, %v422
      %v447 = vpack.c.b16 %v427, %v425
      %v448 = vpack.c.b16 %v428, %v426
      %v449 = vpack.c.b16 %v431, %v429
      %v450 = vpack.c.b16 %v432, %v430
      %v451 = vpack.c.b16 %v435, %v433
      %v452 = vpack.c.b16 %v436, %v434
      %469 = vmatprep.subr.bf16.mxu0 %v438
      %470 = vmatpush1.bf16.msra.mxu0 %v437
      %471 = vmatprep.subr.bf16.mxu0 %v440
      %472 = vmatpush1.bf16.msra.mxu0 %v439
      %473 = vmatprep.subr.bf16.mxu0 %v442
      %474 = vmatpush1.bf16.msra.mxu0 %v441
      %475 = vmatprep.subr.bf16.mxu0 %v444
      %476 = vmatpush1.bf16.msra.mxu0 %v443
      %477 = vmatprep.subr.bf16.mxu0 %v446
      %478 = vmatpush1.bf16.msra.mxu0 %v445
      %479 = vmatprep.subr.bf16.mxu0 %v448
      %480 = vmatpush1.bf16.msra.mxu0 %v447
      %481 = vmatprep.subr.bf16.mxu0 %v450
      %482 = vmatpush1.bf16.msra.mxu0 %v449
      %483 = vmatprep.subr.bf16.mxu0 %v452
      %484 = vmatpush1.bf16.msra.mxu0 %v451
      %485 = vmatprep.subr.bf16.mxu0 0
      %486 = vmatpush1.bf16.msra.mxu0 0
      %487 = vmatprep.subr.bf16.mxu0 0
      %488 = vmatpush1.bf16.msra.mxu0 0
      %489 = vmatprep.subr.bf16.mxu0 0
      %490 = vmatpush1.bf16.msra.mxu0 0
      %491 = vmatprep.subr.bf16.mxu0 0
      %492 = vmatpush1.bf16.msra.mxu0 0
      %493 = vmatprep.subr.bf16.mxu0 0
      %494 = vmatpush1.bf16.msra.mxu0 0
      %495 = vmatprep.subr.bf16.mxu0 0
      %496 = vmatpush1.bf16.msra.mxu0 0
      %497 = vmatprep.subr.bf16.mxu0 0
      %498 = vmatpush1.bf16.msra.mxu0 0
      %499 = vmatprep.subr.bf16.mxu0 0
      %500 = vmatpush1.bf16.msra.mxu0 0
      %501 = vmatprep.mubr.bf16.mxu0 0
      %502 = vmatmul.mubr.bf16.gmra.mrb[0].mxu0 %v351
      %v503 = vpop.f32.mrb[0].mxu0
      %v504 = vadd.f32 %v384, %v503
      %v505 = vpop.f32.mrb[0].mxu0
      %v506 = vadd.f32 %v388, %v505
      %v507 = vpop.f32.mrb[0].mxu0
      %v508 = vadd.f32 %v384, %v507
      %v509 = vpop.f32.mrb[0].mxu0
      %v510 = vadd.f32 %v388, %v509
      %511 = vdwg.mxu0
      %v512 = vmul.f32 %v504, %v504
      %v513 = vmul.f32 %v506, %v506
      %v514 = vmul.f32 %v508, %v508
      %v515 = vmul.f32 %v510, %v510
      %v516 = vmul.f32 %v504, %v512
      %v517 = vmul.f32 %v506, %v513
      %v518 = vmul.f32 %v508, %v514
      %v519 = vmul.f32 %v510, %v515
      %v520 = vmul.f32 %v516, 0.044715
      %v521 = vmul.f32 %v517, 0.044715
      %v522 = vmul.f32 %v518, 0.044715
      %v523 = vmul.f32 %v519, 0.044715
      %v524 = vadd.f32 %v504, %v520
      %v525 = vadd.f32 %v506, %v521
      %v526 = vadd.f32 %v508, %v522
      %v527 = vadd.f32 %v510, %v523
      %v528 = vmul.f32 %v524, 0.7978846
      %v529 = vmul.f32 %v525, 0.7978846
      %v530 = vmul.f32 %v526, 0.7978846
      %v531 = vmul.f32 %v527, 0.7978846
      %v532 = vtanh.pop %v528
      %v533 = vtanh.pop %v529
      %v534 = vtanh.pop %v530
      %v535 = vtanh.pop %v531
      %v536 = vadd.f32 %v532, 1.0
      %v537 = vadd.f32 %v533, 1.0
      %v538 = vadd.f32 %v534, 1.0
      %v539 = vadd.f32 %v535, 1.0
      %v540 = vmul.f32 %v536, 0.5
      %v541 = vmul.f32 %v537, 0.5
      %v542 = vmul.f32 %v538, 0.5
      %v543 = vmul.f32 %v539, 0.5
      %v544 = vmul.f32 %v504, %v540
      %v545 = vmul.f32 %v506, %v541
      %v546 = vmul.f32 %v508, %v542
      %v547 = vmul.f32 %v510, %v543
      %v548 = vpack.c.bf16 %v546, %v544
      %v549 = vpack.c.bf16 %v547, %v545
      %v550 = vld [vmem:[%s4] sm:$0xf]
      %v551 = vld [vmem:[%s4 + $0x4] sm:$0xf]
      %v552 = vld [vmem:[%s4 + $0x8] sm:$0xf]
      %v553 = vld [vmem:[%s4 + $0xc] sm:$0xf]
      %v554 = vld [vmem:[%s4 + $0x10] sm:$0xf]
      %v555 = vld [vmem:[%s4 + $0x14] sm:$0xf]
      %v556 = vld [vmem:[%s4 + $0x18] sm:$0xf]
      %v557 = vld [vmem:[%s4 + $0x1c] sm:$0xf]
      %v558 = vld [vmem:[%s4 + $0x20] sm:$0xf]
      %v559 = vld [vmem:[%s4 + $0x24] sm:$0xf]
      %v560 = vld [vmem:[%s4 + $0x28] sm:$0xf]
      %v561 = vld [vmem:[%s4 + $0x2c] sm:$0xf]
      %v562 = vld [vmem:[%s4 + $0x30] sm:$0xf]
      %v563 = vld [vmem:[%s4 + $0x34] sm:$0xf]
      %v564 = vld [vmem:[%s4 + $0x38] sm:$0xf]
      %v565 = vld [vmem:[%s4 + $0x3c] sm:$0xf]
      %v566 = vld [vmem:[%s4 + $0x40] sm:$0xf]
      %v567 = vld [vmem:[%s4 + $0x44] sm:$0xf]
      %v568 = vld [vmem:[%s4 + $0x48] sm:$0xf]
      %v569 = vld [vmem:[%s4 + $0x4c] sm:$0xf]
      %v570 = vld [vmem:[%s4 + $0x50] sm:$0xf]
      %v571 = vld [vmem:[%s4 + $0x54] sm:$0xf]
      %v572 = vld [vmem:[%s4 + $0x58] sm:$0xf]
      %v573 = vld [vmem:[%s4 + $0x5c] sm:$0xf]
      %v574 = vld [vmem:[%s4 + $0x60] sm:$0xf]
      %v575 = vld [vmem:[%s4 + $0x64] sm:$0xf]
      %v576 = vld [vmem:[%s4 + $0x68] sm:$0xf]
      %v577 = vld [vmem:[%s4 + $0x6c] sm:$0xf]
      %v578 = vld [vmem:[%s4 + $0x70] sm:$0xf]
      %v579 = vld [vmem:[%s4 + $0x74] sm:$0xf]
      %v580 = vld [vmem:[%s4 + $0x78] sm:$0xf]
      %v581 = vld [vmem:[%s4 + $0x7c] sm:$0xf]
      %v614 = vunpack.c.l.b16 %v550
      %v615 = vunpack.c.l.b16 %v551
      %v616 = vunpack.c.l.b16 %v552
      %v617 = vunpack.c.l.b16 %v553
      %v618 = vunpack.c.l.b16 %v554
      %v619 = vunpack.c.l.b16 %v555
      %v620 = vunpack.c.l.b16 %v556
      %v621 = vunpack.c.l.b16 %v557
      %v622 = vunpack.c.l.b16 %v558
      %v623 = vunpack.c.l.b16 %v559
      %v624 = vunpack.c.l.b16 %v560
      %v625 = vunpack.c.l.b16 %v561
      %v626 = vunpack.c.l.b16 %v562
      %v627 = vunpack.c.l.b16 %v563
      %v628 = vunpack.c.l.b16 %v564
      %v629 = vunpack.c.l.b16 %v565
      %v630 = vunpack.c.l.b16 %v566
      %v631 = vunpack.c.l.b16 %v567
      %v632 = vunpack.c.l.b16 %v568
      %v633 = vunpack.c.l.b16 %v569
      %v634 = vunpack.c.l.b16 %v570
      %v635 = vunpack.c.l.b16 %v571
      %v636 = vunpack.c.l.b16 %v572
      %v637 = vunpack.c.l.b16 %v573
      %v638 = vunpack.c.l.b16 %v574
      %v639 = vunpack.c.l.b16 %v575
      %v640 = vunpack.c.l.b16 %v576
      %v641 = vunpack.c.l.b16 %v577
      %v642 = vunpack.c.l.b16 %v578
      %v643 = vunpack.c.l.b16 %v579
      %v644 = vunpack.c.l.b16 %v580
      %v645 = vunpack.c.l.b16 %v581
      %v646 = vpack.c.b16 %v615, %v614
      %v647 = vpack.c.b16 %v617, %v616
      %v648 = vpack.c.b16 %v619, %v618
      %v649 = vpack.c.b16 %v621, %v620
      %v650 = vpack.c.b16 %v623, %v622
      %v651 = vpack.c.b16 %v625, %v624
      %v652 = vpack.c.b16 %v627, %v626
      %v653 = vpack.c.b16 %v629, %v628
      %v654 = vpack.c.b16 %v631, %v630
      %v655 = vpack.c.b16 %v633, %v632
      %v656 = vpack.c.b16 %v635, %v634
      %v657 = vpack.c.b16 %v637, %v636
      %v658 = vpack.c.b16 %v639, %v638
      %v659 = vpack.c.b16 %v641, %v640
      %v660 = vpack.c.b16 %v643, %v642
      %v661 = vpack.c.b16 %v645, %v644
      %678 = vmatprep.subr.bf16.mxu0 0
      %679 = vmatpush1.bf16.msra.mxu0 %v646
      %680 = vmatprep.subr.bf16.mxu0 0
      %681 = vmatpush1.bf16.msra.mxu0 %v647
      %682 = vmatprep.subr.bf16.mxu0 0
      %683 = vmatpush1.bf16.msra.mxu0 %v648
      %684 = vmatprep.subr.bf16.mxu0 0
      %685 = vmatpush1.bf16.msra.mxu0 %v649
      %686 = vmatprep.subr.bf16.mxu0 0
      %687 = vmatpush1.bf16.msra.mxu0 %v650
      %688 = vmatprep.subr.bf16.mxu0 0
      %689 = vmatpush1.bf16.msra.mxu0 %v651
      %690 = vmatprep.subr.bf16.mxu0 0
      %691 = vmatpush1.bf16.msra.mxu0 %v652
      %692 = vmatprep.subr.bf16.mxu0 0
      %693 = vmatpush1.bf16.msra.mxu0 %v653
      %694 = vmatprep.subr.bf16.mxu0 0
      %695 = vmatpush1.bf16.msra.mxu0 %v654
      %696 = vmatprep.subr.bf16.mxu0 0
      %697 = vmatpush1.bf16.msra.mxu0 %v655
      %698 = vmatprep.subr.bf16.mxu0 0
      %699 = vmatpush1.bf16.msra.mxu0 %v656
      %700 = vmatprep.subr.bf16.mxu0 0
      %701 = vmatpush1.bf16.msra.mxu0 %v657
      %702 = vmatprep.subr.bf16.mxu0 0
      %703 = vmatpush1.bf16.msra.mxu0 %v658
      %704 = vmatprep.subr.bf16.mxu0 0
      %705 = vmatpush1.bf16.msra.mxu0 %v659
      %706 = vmatprep.subr.bf16.mxu0 0
      %707 = vmatpush1.bf16.msra.mxu0 %v660
      %708 = vmatprep.subr.bf16.mxu0 0
      %709 = vmatpush1.bf16.msra.mxu0 %v661
      %710 = vmatprep.mubr.bf16.mxu0 %v549
      %711 = vmatmul.mubr.bf16.gmra.mrb[0].mxu0 %v548
      %v712 = vpop.f32.mrb[0].mxu0
      %v713 = vadd.f32 0.0, %v712
      %v714 = vpop.f32.mrb[0].mxu0
      %v715 = vpop.f32.mrb[0].mxu0
      %v716 = vadd.f32 0.0, %v715
      %v717 = vpop.f32.mrb[0].mxu0
      %718 = vdwg.mxu0
      %v719 = vadd.f32 %v349, %v713
      %v720 = vadd.f32 %v350, %v716
      %v721 = vpack.c.bf16 %v720, %v719
      %v722 = vld [vmem:[%s5] sm:$0xf]
      %v723 = vld [vmem:[%s5 + $0x4] sm:$0xf]
      %v724 = vld [vmem:[%s5 + $0x8] sm:$0xf]
      %v725 = vld [vmem:[%s5 + $0xc] sm:$0xf]
      %v726 = vld [vmem:[%s5 + $0x10] sm:$0xf]
      %v727 = vld [vmem:[%s5 + $0x14] sm:$0xf]
      %v728 = vld [vmem:[%s5 + $0x18] sm:$0xf]
      %v729 = vld [vmem:[%s5 + $0x1c] sm:$0xf]
      %v730 = vld [vmem:[%s5 + $0x20] sm:$0xf]
      %v731 = vld [vmem:[%s5 + $0x24] sm:$0xf]
      %v732 = vld [vmem:[%s5 + $0x28] sm:$0xf]
      %v733 = vld [vmem:[%s5 + $0x2c] sm:$0xf]
      %v734 = vld [vmem:[%s5 + $0x30] sm:$0xf]
      %v735 = vld [vmem:[%s5 + $0x34] sm:$0xf]
      %v736 = vld [vmem:[%s5 + $0x38] sm:$0xf]
      %v737 = vld [vmem:[%s5 + $0x3c] sm:$0xf]
      %v738 = vld [vmem:[%s6] sm:$0x1]
      %v739 = vunpack.c.l.bf16 %v738
      %v740 = vlaneseq
      %v741 = vshrl.u32 %v740, 7
      %v742 = vsub.s32 0, %v741
      %v743 = vrot.slane %v739, %v742
      %v760 = vunpack.c.l.b16 %v722
      %v761 = vunpack.c.l.b16 %v723
      %v762 = vunpack.c.l.b16 %v724
      %v763 = vunpack.c.l.b16 %v725
      %v764 = vunpack.c.l.b16 %v726
      %v765 = vunpack.c.l.b16 %v727
      %v766 = vunpack.c.l.b16 %v728
      %v767 = vunpack.c.l.b16 %v729
      %v768 = vunpack.c.l.b16 %v730
      %v769 = vunpack.c.l.b16 %v731
      %v770 = vunpack.c.l.b16 %v732
      %v771 = vunpack.c.l.b16 %v733
      %v772 = vunpack.c.l.b16 %v734
      %v773 = vunpack.c.l.b16 %v735
      %v774 = vunpack.c.l.b16 %v736
      %v775 = vunpack.c.l.b16 %v737
      %v776 = vpack.c.b16 %v761, %v760
      %v777 = vpack.c.b16 %v763, %v762
      %v778 = vpack.c.b16 %v765, %v764
      %v779 = vpack.c.b16 %v767, %v766
      %v780 = vpack.c.b16 %v769, %v768
      %v781 = vpack.c.b16 %v771, %v770
      %v782 = vpack.c.b16 %v773, %v772
      %v783 = vpack.c.b16 %v775, %v774
      %792 = vmatprep.subr.bf16.mxu0 0
      %793 = vmatpush1.bf16.msra.mxu0 %v776
      %794 = vmatprep.subr.bf16.mxu0 0
      %795 = vmatpush1.bf16.msra.mxu0 %v777
      %796 = vmatprep.subr.bf16.mxu0 0
      %797 = vmatpush1.bf16.msra.mxu0 %v778
      %798 = vmatprep.subr.bf16.mxu0 0
      %799 = vmatpush1.bf16.msra.mxu0 %v779
      %800 = vmatprep.subr.bf16.mxu0 0
      %801 = vmatpush1.bf16.msra.mxu0 %v780
      %802 = vmatprep.subr.bf16.mxu0 0
      %803 = vmatpush1.bf16.msra.mxu0 %v781
      %804 = vmatprep.subr.bf16.mxu0 0
      %805 = vmatpush1.bf16.msra.mxu0 %v782
      %806 = vmatprep.subr.bf16.mxu0 0
      %807 = vmatpush1.bf16.msra.mxu0 %v783
      %808 = vmatprep.subr.bf16.mxu0 0
      %809 = vmatpush1.bf16.msra.mxu0 0
      %810 = vmatprep.subr.bf16.mxu0 0
      %811 = vmatpush1.bf16.msra.mxu0 0
      %812 = vmatprep.subr.bf16.mxu0 0
      %813 = vmatpush1.bf16.msra.mxu0 0
      %814 = vmatprep.subr.bf16.mxu0 0
      %815 = vmatpush1.bf16.msra.mxu0 0
      %816 = vmatprep.subr.bf16.mxu0 0
      %817 = vmatpush1.bf16.msra.mxu0 0
      %818 = vmatprep.subr.bf16.mxu0 0
      %819 = vmatpush1.bf16.msra.mxu0 0
      %820 = vmatprep.subr.bf16.mxu0 0
      %821 = vmatpush1.bf16.msra.mxu0 0
      %822 = vmatprep.subr.bf16.mxu0 0
      %823 = vmatpush1.bf16.msra.mxu0 0
      %824 = vmatprep.mubr.bf16.mxu0 0
      %825 = vmatmul.mubr.bf16.gmra.mrb[0].mxu0 %v721
      %v826 = vpop.f32.mrb[0].mxu0
      %v827 = vadd.f32 %v743, %v826
      %v828 = vpop.f32.mrb[0].mxu0
      %v829 = vpop.f32.mrb[0].mxu0
      %v830 = vadd.f32 %v743, %v829
      %v831 = vpop.f32.mrb[0].mxu0
      %832 = vdwg.mxu0
      %v833 = vpack.c.bf16 %v830, %v827
      %v835 = vunpack.c.l.b16 %v833
      %v836 = vunpack.c.h.b16 %v833
      %v837 = vpack.c.b16 %v835, %v835
      %v838 = vpack.c.b16 %v836, %v836
      %841 = vst [vmem:[%s338] sm:$0xf] %v837
      %842 = vst [vmem:[%s338 + $0x4] sm:$0xf] %v838
      %s843 = smul.u32 2, %s22
      %p844 = scmp.lt.s32.totalorder %s23, 1
      %s845 = scalar_select %p844, %s23, 1
      %p846 = scmp.lt.s32.totalorder %s843, 1
      %s847 = scalar_select %p846, %s843, 1
      %s848 = smul.addr %s845, 2
      %s849 = sadd.s32 %s847, %s848
      %s850 = smul.addr %s849, 4
      %s851 = scalar_lea.vmem %s7, %s850
      // Predicated region
      $region49: #{_forward_impl.3} parent=47 // pred_check
        %p852 = pneg %p209
      $region50: #{_forward_impl.3} parent=47 // pred_check_branch
        %854 = sbr.rel (%p852) target = $region52
      $region51: #{_forward_impl.3} parent=47 // pred_region
        %s855 = smul.u32 2, %s22
      $region52: #{_forward_impl.3} parent=47 // pred_fallthru
        _
    $region48: #{_forward_impl.3} parent=5 // pred_fallthru
      _
    %p856 = scmp.le.s32.totalorder 2, %s13
    // Predicated region
    $region53: #{_forward_impl.3} parent=5 // pred_check
      %p857 = pneg %p856
    $region54: #{_forward_impl.3} parent=5 // pred_check_branch
      %859 = sbr.rel (%p857) target = $region56
    $region55: #{_forward_impl.3} parent=5 // pred_region
      %s860 = ssub.s32 %s13, 2
      // Predicated region
      $region57: #{_forward_impl.3} parent=55 // pred_check
        %p861 = pneg %p215
      $region58: #{_forward_impl.3} parent=55 // pred_check_branch
        %863 = sbr.rel (%p861) target = $region60
      $region59: #{_forward_impl.3} parent=55 // pred_region
        %s864 = smul.u32 2, %s24
        %p865 = scmp.lt.s32.totalorder %s25, 1
        %s866 = scalar_select %p865, %s25, 1
        %p867 = scmp.lt.s32.totalorder %s864, 1
        %s868 = scalar_select %p867, %s864, 1
        %s869 = smul.addr %s866, 2
        %s870 = sadd.s32 %s868, %s869
        %s871 = smul.addr %s870, 4
        %s872 = scalar_lea.vmem %s7, %s871
      $region60: #{_forward_impl.3} parent=55 // pred_fallthru
        _
    $region56: #{_forward_impl.3} parent=5 // pred_fallthru
      _
  $region6: #{_forward_impl.3} parent=0 // loop_footer
    %s17 = sadd.s32 1, %s13
  $region7: #{_forward_impl.3} parent=0 // loop_footer_branch
    %12 = sbr.rel target = $region3
  $region8: #{_forward_impl.3} parent=0 // loop_exit
    _

</llo_original>
